<compile_context>
chip_gen: v5e
topology: v5e:2x2
jax: 0.10.0
libtpu: 0.0.40
codegen_flags: <defaults>
</compile_context>

<pallas_src>
import functools
import math

import jax
import jax.numpy as jnp
from jax.experimental import pallas as pl
from jax.experimental.pallas import tpu as pltpu


_VMEM_LIMIT_BYTES = 48 * 1024 * 1024  # fits v7x (64 MiB physical) with headroom


def _pick_cin_tile(cin):
    """Reduction (Cin) tile: full when small, else a 128-multiple divisor."""
    if cin <= 768:
        return cin
    for t in (640, 512, 384, 256, 128):
        if cin % t == 0:
            return t
    return cin


def _pick_cout_tile(cout):
    """Returns (padded Cout, Cout tile).  Keeps the output lane-dense."""
    if cout < 128:
        return 128, 128          # pad tiny channel counts up to one full lane group
    if cout % 256 == 0:
        return cout, 256         # native v6e/v7x MXU width
    if cout % 128 == 0:
        return cout, 128
    return cout, cout            # full-dim block (allowed even if not 128-aligned)


def _pick_row_tile(ho):
    if ho <= 32:
        return ho
    for t in (32, 16, 8, 4, 2, 1):
        if ho % t == 0:
            return t
    return 1


# --------------------------------------------------------------------------- #
# Conv (3x3, stride 2) downsample
# --------------------------------------------------------------------------- #
def _conv_down_kernel(ph_ref, w_ref, b_ref, o_ref, acc_ref, *, wh):
    """One (batch, Cout-tile) output slab; Cin reduction over grid axis 2.

    ph_ref : (4, Hh*Wh, TCI)  parity phases of the zero-padded input, flattened
                              over (row, col); Hh = Ho+2, Wh = Wo+1.
    w_ref  : (3, 3, TCI, TCO) weights (input dtype)
    b_ref  : (1, TCO)         bias, float32
    o_ref  : (Ho*Wh, TCO)     output slab (input dtype); column Wo is discarded
                              by the caller.
    acc_ref: (Ho*Wh, TCO)     float32 accumulator scratch
    """
    ci = pl.program_id(2)

    @pl.when(ci == 0)
    def _():
        acc_ref[...] = jnp.zeros_like(acc_ref)

    m = o_ref.shape[0]  # Ho * Wh
    for kh in range(3):
        for kw in range(3):
            phase = (kh % 2) * 2 + (kw % 2)
            start = (kh // 2) * wh + (kw // 2)   # static -> plain offset load
            lhs = ph_ref[phase, pl.ds(start, m), :]           # (Ho*Wh, TCI)
            acc_ref[...] += jnp.dot(lhs, w_ref[kh, kw],
                                    preferred_element_type=jnp.float32)

    @pl.when(ci == pl.num_programs(2) - 1)
    def _():
        o_ref[...] = (acc_ref[...] + b_ref[...]).astype(o_ref.dtype)


def _conv_downsample(x_nchw, weight, bias, padding):
    """3x3 / stride-2 Conv2d, including the padding==0 (pad (0,1,0,1)) branch."""
    N, Cin, H, W = x_nchw.shape
    Cout = weight.shape[0]
    cdt = x_nchw.dtype  # compute/output dtype follows the input (bf16 in -> bf16 MXU)

    if padding == 0:
        pad_t = pad_l = 0
        Hp, Wp = H + 1, W + 1                      # F.pad(x, (0, 1, 0, 1))
    else:
        pad_t = pad_l = padding
        Hp, Wp = H + 2 * padding, W + 2 * padding
    Ho = (Hp - 3) // 2 + 1
    Wo = (Wp - 3) // 2 + 1
    Hh, Wh = Ho + 2, Wo + 1   # extra zero rows/col: identical phase shapes and
    M = Ho * Wh               # in-bounds flat tap windows inside the kernel.

    # One fused pad + transpose + parity split: NCHW -> (N, 4, Hh*Wh, Cin),
    # phase index p = 2*(row parity) + (col parity).
    xp = jnp.pad(x_nchw, ((0, 0), (0, 0),
                          (pad_t, 2 * Hh - H - pad_t),
                          (pad_l, 2 * Wh - W - pad_l)))
    ph = xp.reshape(N, Cin, Hh, 2, Wh, 2)
    ph = jnp.transpose(ph, (0, 3, 5, 2, 4, 1)).reshape(N, 4, Hh * Wh, Cin)

    Cout_p, TCO = _pick_cout_tile(Cout)
    TCI = _pick_cin_tile(Cin)

    w = jnp.transpose(weight, (2, 3, 1, 0)).astype(cdt)        # (3, 3, Cin, Cout)
    w = jnp.pad(w, ((0, 0), (0, 0), (0, 0), (0, Cout_p - Cout)))
    b = jnp.pad(bias.astype(jnp.float32), (0, Cout_p - Cout)).reshape(1, Cout_p)

    grid = (N, Cout_p // TCO, Cin // TCI)
    itemsize = jnp.dtype(cdt).itemsize
    cost = pl.CostEstimate(
        flops=2 * 9 * N * M * Cin * Cout_p,
        transcendentals=0,
        bytes_accessed=(N * 4 * Hh * Wh * Cin * itemsize * (Cout_p // TCO)
                        + N * 9 * Cin * Cout_p * itemsize
                        + N * M * Cout_p * itemsize),
    )

    out = pl.pallas_call(
        functools.partial(_conv_down_kernel, wh=Wh),
        out_shape=jax.ShapeDtypeStruct((N, M, Cout_p), cdt),
        grid=grid,
        in_specs=[
            pl.BlockSpec((None, 4, Hh * Wh, TCI), lambda n, co, ci: (n, 0, 0, ci)),
            pl.BlockSpec((3, 3, TCI, TCO), lambda n, co, ci: (0, 0, ci, co)),
            pl.BlockSpec((1, TCO), lambda n, co, ci: (0, co)),
        ],
        out_specs=pl.BlockSpec((None, M, TCO), lambda n, co, ci: (n, 0, co)),
        scratch_shapes=[pltpu.VMEM((M, TCO), jnp.float32)],
        compiler_params=pltpu.CompilerParams(
            dimension_semantics=("parallel", "parallel", "arbitrary"),
            vmem_limit_bytes=_VMEM_LIMIT_BYTES),
        cost_estimate=cost,
    )(ph, w, b)

    # Drop the extra (wrap-around) column and the Cout padding, back to NCHW.
    out = out.reshape(N, Ho, Wh, Cout_p)[:, :, :Wo, :Cout]
    return jnp.transpose(out, (0, 3, 1, 2))


# --------------------------------------------------------------------------- #
# AvgPool2d(kernel_size=2, stride=2) downsample
# --------------------------------------------------------------------------- #
def _avgpool_kernel(ph_ref, o_ref):
    # ph_ref: (4, TH, Wo, C) stride-2 parity phases; o_ref: (TH, Wo, C)
    s = (ph_ref[0].astype(jnp.float32) + ph_ref[1].astype(jnp.float32)
         + ph_ref[2].astype(jnp.float32) + ph_ref[3].astype(jnp.float32))
    o_ref[...] = (s * 0.25).astype(o_ref.dtype)


def _avgpool_downsample(x_nchw):
    N, C, H, W = x_nchw.shape
    Ho, Wo = H // 2, W // 2
    # One fused crop + transpose + parity split: NCHW -> (N, 4, Ho, Wo, C).
    xc = x_nchw[:, :, :2 * Ho, :2 * Wo]
    ph = xc.reshape(N, C, Ho, 2, Wo, 2)
    ph = jnp.transpose(ph, (0, 3, 5, 2, 4, 1)).reshape(N, 4, Ho, Wo, C)

    TH = _pick_row_tile(Ho)
    out = pl.pallas_call(
        _avgpool_kernel,
        out_shape=jax.ShapeDtypeStruct((N, Ho, Wo, C), x_nchw.dtype),
        grid=(N, Ho // TH),
        in_specs=[pl.BlockSpec((None, 4, TH, Wo, C), lambda n, h: (n, 0, h, 0, 0))],
        out_specs=pl.BlockSpec((None, TH, Wo, C), lambda n, h: (n, h, 0, 0)),
        compiler_params=pltpu.CompilerParams(
            dimension_semantics=("parallel", "parallel"),
            vmem_limit_bytes=_VMEM_LIMIT_BYTES),
    )(ph)
    return jnp.transpose(out, (0, 3, 1, 2))


# --------------------------------------------------------------------------- #
# Module
# --------------------------------------------------------------------------- #
class AdaDownsample2D:
    """Pallas port of adadiffusers AdaDownsample2D (forward only)."""

    def __init__(self, modules, channels, use_conv=False, out_channels=None,
                 padding=1, key=None):
        self.channels = channels
        self.out_channels = out_channels or channels
        self.use_conv = use_conv
        self.padding = padding
        self.modules = modules
        if use_conv:
            key = key if key is not None else jax.random.PRNGKey(0)
            kw_, kb_ = jax.random.split(key)
            fan_in = channels * 3 * 3
            bound = 1.0 / math.sqrt(fan_in)   # nn.Conv2d default init range
            self.weight = jax.random.uniform(
                kw_, (self.out_channels, channels, 3, 3), jnp.float32, -bound, bound)
            self.bias = jax.random.uniform(
                kb_, (self.out_channels,), jnp.float32, -bound, bound)
        else:
            assert channels == self.out_channels
            self.weight = None
            self.bias = None
        # TODO(synk): CNNAdapter is not defined in the provided reference source, so the
        # 'upsampler'-gated downsampler_adapter branch is omitted (adapter is None).
        self.downsampler_adapter = None

    def __call__(self, hidden_states):
        assert hidden_states.shape[1] == self.channels
        if self.use_conv:
            out = _conv_downsample(hidden_states, self.weight, self.bias, self.padding)
        else:
            out = _avgpool_downsample(hidden_states)
        # downsampler_adapter is None -> no-op (see TODO above)
        return out


if __name__ == "__main__":
    key = jax.random.PRNGKey(0)
    kx, kp = jax.random.split(key)
    x = jax.random.normal(kx, (2, 4, 16, 16), jnp.float32)

    # conv downsampling path (use_conv=True, padding=1)
    mod = AdaDownsample2D(modules=("resnet",), channels=4, use_conv=True,
                          out_channels=4, padding=1, key=kp)
    out = jax.block_until_ready(mod(x))
    assert out.shape == (2, 4, 8, 8), out.shape
    assert out.dtype == x.dtype
    ref = jax.lax.conv_general_dilated(
        x, mod.weight, window_strides=(2, 2), padding=((1, 1), (1, 1)),
        dimension_numbers=("NCHW", "OIHW", "NCHW")) + mod.bias[None, :, None, None]
    assert jnp.allclose(out, ref, atol=1e-4, rtol=1e-4), float(jnp.max(jnp.abs(out - ref)))

    # conv downsampling path, padding=0 branch (module pads (0,1,0,1) itself)
    mod0 = AdaDownsample2D(modules=("resnet",), channels=4, use_conv=True,
                           out_channels=6, padding=0, key=kp)
    out0 = jax.block_until_ready(mod0(x))
    assert out0.shape == (2, 6, 8, 8), out0.shape
    ref0 = jax.lax.conv_general_dilated(
        x, mod0.weight, window_strides=(2, 2), padding=((0, 1), (0, 1)),
        dimension_numbers=("NCHW", "OIHW", "NCHW")) + mod0.bias[None, :, None, None]
    assert jnp.allclose(out0, ref0, atol=1e-4, rtol=1e-4), float(jnp.max(jnp.abs(out0 - ref0)))

    # avg-pool downsampling path (use_conv=False)
    mod2 = AdaDownsample2D(modules=("resnet",), channels=4, use_conv=False)
    out2 = jax.block_until_ready(mod2(x))
    ref2 = jax.lax.reduce_window(x, 0.0, jax.lax.add,
                                 (1, 1, 2, 2), (1, 1, 2, 2), "VALID") / 4.0
    assert out2.shape == (2, 4, 8, 8), out2.shape
    assert out2.dtype == x.dtype
    assert jnp.allclose(out2, ref2, atol=1e-5, rtol=1e-5)

    print("KERNEL_OK")
</pallas_src>

<mosaic_0001>
module attributes {stable_mosaic.version = 11 : i64} {
  func.func @_conv_down_kernel(%arg0: i32, %arg1: i32, %arg2: i32, %arg3: memref<1x4x90x4xf32, #tpu.memory_space<vmem>>, %arg4: memref<3x3x4x128xf32, #tpu.memory_space<vmem>>, %arg5: memref<1x128xf32, #tpu.memory_space<vmem>>, %arg6: memref<1x72x128xf32, #tpu.memory_space<vmem>>, %arg7: memref<72x128xf32, #tpu.memory_space<vmem>>) attributes {dimension_semantics = [#tpu.dimension_semantics<parallel>, #tpu.dimension_semantics<parallel>, #tpu.dimension_semantics<arbitrary>], iteration_bounds = array<i64: 2, 1, 1>, scalar_prefetch = 0 : i64, scratch_operands = 1 : i64, tpu.core_type = #tpu.core_type<tc>, window_params = [{transform_indices = @transform_0, window_bounds = array<i64: 1, 4, 90, 4>}, {transform_indices = @transform_1, window_bounds = array<i64: 3, 3, 4, 128>}, {transform_indices = @transform_2, window_bounds = array<i64: 1, 128>}, {transform_indices = @transform_3, window_bounds = array<i64: 1, 72, 128>}]} {
    %c0_i32 = arith.constant 0 : i32
    %0 = arith.cmpi eq, %arg2, %c0_i32 : i32
    %1 = arith.extui %0 : i1 to i32
    %c0_i32_0 = arith.constant 0 : i32
    %2 = arith.cmpi ne, %1, %c0_i32_0 : i32
    scf.if %2 {
      %cst_113 = arith.constant 0.000000e+00 : f32
      %78 = vector.broadcast %cst_113 : f32 to vector<72x128xf32>
      %c0_114 = arith.constant 0 : index
      %c0_115 = arith.constant 0 : index
      %79 = vector.load %arg7[%c0_114, %c0_115] : memref<72x128xf32, #tpu.memory_space<vmem>>, vector<72x128xf32>
      tpu.vector_store %arg7[%c0_114, %c0_115], %78 {strides = array<i32>} : memref<72x128xf32, #tpu.memory_space<vmem>>, vector<72x128xf32>,
    } else {
    }
    %c0 = arith.constant 0 : index
    %c0_1 = arith.constant 0 : index
    %c0_2 = arith.constant 0 : index
    %c0_3 = arith.constant 0 : index
    %3 = vector.load %arg3[%c0, %c0_1, %c0_2, %c0_3] : memref<1x4x90x4xf32, #tpu.memory_space<vmem>>, vector<1x1x72x4xf32>
    %4 = vector.shape_cast %3 : vector<1x1x72x4xf32> to vector<72x4xf32>
    %c0_4 = arith.constant 0 : index
    %c0_5 = arith.constant 0 : index
    %5 = vector.load %arg7[%c0_4, %c0_5] : memref<72x128xf32, #tpu.memory_space<vmem>>, vector<72x128xf32>
    %c0_6 = arith.constant 0 : index
    %c0_7 = arith.constant 0 : index
    %c0_8 = arith.constant 0 : index
    %c0_9 = arith.constant 0 : index
    %6 = vector.load %arg4[%c0_6, %c0_7, %c0_8, %c0_9] : memref<3x3x4x128xf32, #tpu.memory_space<vmem>>, vector<1x1x4x128xf32>
    %7 = vector.shape_cast %6 : vector<1x1x4x128xf32> to vector<4x128xf32>
    %cst = arith.constant dense<0.000000e+00> : vector<72x128xf32>
    %8 = tpu.matmul %4, %7, %cst {dimension_numbers = #tpu.dot_dimension_numbers<[1], [0], [0], [1], [0, 0, 1, 1], [], []>} : vector<72x4xf32>, vector<4x128xf32>, vector<72x128xf32> -> vector<72x128xf32>
    %9 = arith.addf %5, %8 : vector<72x128xf32>
    %c0_10 = arith.constant 0 : index
    %c0_11 = arith.constant 0 : index
    %10 = vector.load %arg7[%c0_10, %c0_11] : memref<72x128xf32, #tpu.memory_space<vmem>>, vector<72x128xf32>
    tpu.vector_store %arg7[%c0_10, %c0_11], %9 {strides = array<i32>} : memref<72x128xf32, #tpu.memory_space<vmem>>, vector<72x128xf32>,
    %c0_12 = arith.constant 0 : index
    %c1 = arith.constant 1 : index
    %c0_13 = arith.constant 0 : index
    %c0_14 = arith.constant 0 : index
    %11 = vector.load %arg3[%c0_12, %c1, %c0_13, %c0_14] : memref<1x4x90x4xf32, #tpu.memory_space<vmem>>, vector<1x1x72x4xf32>
    %12 = vector.shape_cast %11 : vector<1x1x72x4xf32> to vector<72x4xf32>
    %c0_15 = arith.constant 0 : index
    %c0_16 = arith.constant 0 : index
    %13 = vector.load %arg7[%c0_15, %c0_16] : memref<72x128xf32, #tpu.memory_space<vmem>>, vector<72x128xf32>
    %c0_17 = arith.constant 0 : index
    %c1_18 = arith.constant 1 : index
    %c0_19 = arith.constant 0 : index
    %c0_20 = arith.constant 0 : index
    %14 = vector.load %arg4[%c0_17, %c1_18, %c0_19, %c0_20] : memref<3x3x4x128xf32, #tpu.memory_space<vmem>>, vector<1x1x4x128xf32>
    %15 = vector.shape_cast %14 : vector<1x1x4x128xf32> to vector<4x128xf32>
    %cst_21 = arith.constant dense<0.000000e+00> : vector<72x128xf32>
    %16 = tpu.matmul %12, %15, %cst_21 {dimension_numbers = #tpu.dot_dimension_numbers<[1], [0], [0], [1], [0, 0, 1, 1], [], []>} : vector<72x4xf32>, vector<4x128xf32>, vector<72x128xf32> -> vector<72x128xf32>
    %17 = arith.addf %13, %16 : vector<72x128xf32>
    %c0_22 = arith.constant 0 : index
    %c0_23 = arith.constant 0 : index
    %18 = vector.load %arg7[%c0_22, %c0_23] : memref<72x128xf32, #tpu.memory_space<vmem>>, vector<72x128xf32>
    tpu.vector_store %arg7[%c0_22, %c0_23], %17 {strides = array<i32>} : memref<72x128xf32, #tpu.memory_space<vmem>>, vector<72x128xf32>,
    %c0_24 = arith.constant 0 : index
    %c0_25 = arith.constant 0 : index
    %c1_26 = arith.constant 1 : index
    %c0_27 = arith.constant 0 : index
    %19 = vector.load %arg3[%c0_24, %c0_25, %c1_26, %c0_27] : memref<1x4x90x4xf32, #tpu.memory_space<vmem>>, vector<1x1x72x4xf32>
    %20 = vector.shape_cast %19 : vector<1x1x72x4xf32> to vector<72x4xf32>
    %c0_28 = arith.constant 0 : index
    %c0_29 = arith.constant 0 : index
    %21 = vector.load %arg7[%c0_28, %c0_29] : memref<72x128xf32, #tpu.memory_space<vmem>>, vector<72x128xf32>
    %c0_30 = arith.constant 0 : index
    %c2 = arith.constant 2 : index
    %c0_31 = arith.constant 0 : index
    %c0_32 = arith.constant 0 : index
    %22 = vector.load %arg4[%c0_30, %c2, %c0_31, %c0_32] : memref<3x3x4x128xf32, #tpu.memory_space<vmem>>, vector<1x1x4x128xf32>
    %23 = vector.shape_cast %22 : vector<1x1x4x128xf32> to vector<4x128xf32>
    %cst_33 = arith.constant dense<0.000000e+00> : vector<72x128xf32>
    %24 = tpu.matmul %20, %23, %cst_33 {dimension_numbers = #tpu.dot_dimension_numbers<[1], [0], [0], [1], [0, 0, 1, 1], [], []>} : vector<72x4xf32>, vector<4x128xf32>, vector<72x128xf32> -> vector<72x128xf32>
    %25 = arith.addf %21, %24 : vector<72x128xf32>
    %c0_34 = arith.constant 0 : index
    %c0_35 = arith.constant 0 : index
    %26 = vector.load %arg7[%c0_34, %c0_35] : memref<72x128xf32, #tpu.memory_space<vmem>>, vector<72x128xf32>
    tpu.vector_store %arg7[%c0_34, %c0_35], %25 {strides = array<i32>} : memref<72x128xf32, #tpu.memory_space<vmem>>, vector<72x128xf32>,
    %c0_36 = arith.constant 0 : index
    %c2_37 = arith.constant 2 : index
    %c0_38 = arith.constant 0 : index
    %c0_39 = arith.constant 0 : index
    %27 = vector.load %arg3[%c0_36, %c2_37, %c0_38, %c0_39] : memref<1x4x90x4xf32, #tpu.memory_space<vmem>>, vector<1x1x72x4xf32>
    %28 = vector.shape_cast %27 : vector<1x1x72x4xf32> to vector<72x4xf32>
    %c0_40 = arith.constant 0 : index
    %c0_41 = arith.constant 0 : index
    %29 = vector.load %arg7[%c0_40, %c0_41] : memref<72x128xf32, #tpu.memory_space<vmem>>, vector<72x128xf32>
    %c1_42 = arith.constant 1 : index
    %c0_43 = arith.constant 0 : index
    %c0_44 = arith.constant 0 : index
    %c0_45 = arith.constant 0 : index
    %30 = vector.load %arg4[%c1_42, %c0_43, %c0_44, %c0_45] : memref<3x3x4x128xf32, #tpu.memory_space<vmem>>, vector<1x1x4x128xf32>
    %31 = vector.shape_cast %30 : vector<1x1x4x128xf32> to vector<4x128xf32>
    %cst_46 = arith.constant dense<0.000000e+00> : vector<72x128xf32>
    %32 = tpu.matmul %28, %31, %cst_46 {dimension_numbers = #tpu.dot_dimension_numbers<[1], [0], [0], [1], [0, 0, 1, 1], [], []>} : vector<72x4xf32>, vector<4x128xf32>, vector<72x128xf32> -> vector<72x128xf32>
    %33 = arith.addf %29, %32 : vector<72x128xf32>
    %c0_47 = arith.constant 0 : index
    %c0_48 = arith.constant 0 : index
    %34 = vector.load %arg7[%c0_47, %c0_48] : memref<72x128xf32, #tpu.memory_space<vmem>>, vector<72x128xf32>
    tpu.vector_store %arg7[%c0_47, %c0_48], %33 {strides = array<i32>} : memref<72x128xf32, #tpu.memory_space<vmem>>, vector<72x128xf32>,
    %c0_49 = arith.constant 0 : index
    %c3 = arith.constant 3 : index
    %c0_50 = arith.constant 0 : index
    %c0_51 = arith.constant 0 : index
    %35 = vector.load %arg3[%c0_49, %c3, %c0_50, %c0_51] : memref<1x4x90x4xf32, #tpu.memory_space<vmem>>, vector<1x1x72x4xf32>
    %36 = vector.shape_cast %35 : vector<1x1x72x4xf32> to vector<72x4xf32>
    %c0_52 = arith.constant 0 : index
    %c0_53 = arith.constant 0 : index
    %37 = vector.load %arg7[%c0_52, %c0_53] : memref<72x128xf32, #tpu.memory_space<vmem>>, vector<72x128xf32>
    %c1_54 = arith.constant 1 : index
    %c1_55 = arith.constant 1 : index
    %c0_56 = arith.constant 0 : index
    %c0_57 = arith.constant 0 : index
    %38 = vector.load %arg4[%c1_54, %c1_55, %c0_56, %c0_57] : memref<3x3x4x128xf32, #tpu.memory_space<vmem>>, vector<1x1x4x128xf32>
    %39 = vector.shape_cast %38 : vector<1x1x4x128xf32> to vector<4x128xf32>
    %cst_58 = arith.constant dense<0.000000e+00> : vector<72x128xf32>
    %40 = tpu.matmul %36, %39, %cst_58 {dimension_numbers = #tpu.dot_dimension_numbers<[1], [0], [0], [1], [0, 0, 1, 1], [], []>} : vector<72x4xf32>, vector<4x128xf32>, vector<72x128xf32> -> vector<72x128xf32>
    %41 = arith.addf %37, %40 : vector<72x128xf32>
    %c0_59 = arith.constant 0 : index
    %c0_60 = arith.constant 0 : index
    %42 = vector.load %arg7[%c0_59, %c0_60] : memref<72x128xf32, #tpu.memory_space<vmem>>, vector<72x128xf32>
    tpu.vector_store %arg7[%c0_59, %c0_60], %41 {strides = array<i32>} : memref<72x128xf32, #tpu.memory_space<vmem>>, vector<72x128xf32>,
    %c0_61 = arith.constant 0 : index
    %c2_62 = arith.constant 2 : index
    %c1_63 = arith.constant 1 : index
    %c0_64 = arith.constant 0 : index
    %43 = vector.load %arg3[%c0_61, %c2_62, %c1_63, %c0_64] : memref<1x4x90x4xf32, #tpu.memory_space<vmem>>, vector<1x1x72x4xf32>
    %44 = vector.shape_cast %43 : vector<1x1x72x4xf32> to vector<72x4xf32>
    %c0_65 = arith.constant 0 : index
    %c0_66 = arith.constant 0 : index
    %45 = vector.load %arg7[%c0_65, %c0_66] : memref<72x128xf32, #tpu.memory_space<vmem>>, vector<72x128xf32>
    %c1_67 = arith.constant 1 : index
    %c2_68 = arith.constant 2 : index
    %c0_69 = arith.constant 0 : index
    %c0_70 = arith.constant 0 : index
    %46 = vector.load %arg4[%c1_67, %c2_68, %c0_69, %c0_70] : memref<3x3x4x128xf32, #tpu.memory_space<vmem>>, vector<1x1x4x128xf32>
    %47 = vector.shape_cast %46 : vector<1x1x4x128xf32> to vector<4x128xf32>
    %cst_71 = arith.constant dense<0.000000e+00> : vector<72x128xf32>
    %48 = tpu.matmul %44, %47, %cst_71 {dimension_numbers = #tpu.dot_dimension_numbers<[1], [0], [0], [1], [0, 0, 1, 1], [], []>} : vector<72x4xf32>, vector<4x128xf32>, vector<72x128xf32> -> vector<72x128xf32>
    %49 = arith.addf %45, %48 : vector<72x128xf32>
    %c0_72 = arith.constant 0 : index
    %c0_73 = arith.constant 0 : index
    %50 = vector.load %arg7[%c0_72, %c0_73] : memref<72x128xf32, #tpu.memory_space<vmem>>, vector<72x128xf32>
    tpu.vector_store %arg7[%c0_72, %c0_73], %49 {strides = array<i32>} : memref<72x128xf32, #tpu.memory_space<vmem>>, vector<72x128xf32>,
    %c0_74 = arith.constant 0 : index
    %c0_75 = arith.constant 0 : index
    %c9 = arith.constant 9 : index
    %c0_76 = arith.constant 0 : index
    %51 = vector.load %arg3[%c0_74, %c0_75, %c9, %c0_76] : memref<1x4x90x4xf32, #tpu.memory_space<vmem>>, vector<1x1x72x4xf32>
    %52 = vector.shape_cast %51 : vector<1x1x72x4xf32> to vector<72x4xf32>
    %c0_77 = arith.constant 0 : index
    %c0_78 = arith.constant 0 : index
    %53 = vector.load %arg7[%c0_77, %c0_78] : memref<72x128xf32, #tpu.memory_space<vmem>>, vector<72x128xf32>
    %c2_79 = arith.constant 2 : index
    %c0_80 = arith.constant 0 : index
    %c0_81 = arith.constant 0 : index
    %c0_82 = arith.constant 0 : index
    %54 = vector.load %arg4[%c2_79, %c0_80, %c0_81, %c0_82] : memref<3x3x4x128xf32, #tpu.memory_space<vmem>>, vector<1x1x4x128xf32>
    %55 = vector.shape_cast %54 : vector<1x1x4x128xf32> to vector<4x128xf32>
    %cst_83 = arith.constant dense<0.000000e+00> : vector<72x128xf32>
    %56 = tpu.matmul %52, %55, %cst_83 {dimension_numbers = #tpu.dot_dimension_numbers<[1], [0], [0], [1], [0, 0, 1, 1], [], []>} : vector<72x4xf32>, vector<4x128xf32>, vector<72x128xf32> -> vector<72x128xf32>
    %57 = arith.addf %53, %56 : vector<72x128xf32>
    %c0_84 = arith.constant 0 : index
    %c0_85 = arith.constant 0 : index
    %58 = vector.load %arg7[%c0_84, %c0_85] : memref<72x128xf32, #tpu.memory_space<vmem>>, vector<72x128xf32>
    tpu.vector_store %arg7[%c0_84, %c0_85], %57 {strides = array<i32>} : memref<72x128xf32, #tpu.memory_space<vmem>>, vector<72x128xf32>,
    %c0_86 = arith.constant 0 : index
    %c1_87 = arith.constant 1 : index
    %c9_88 = arith.constant 9 : index
    %c0_89 = arith.constant 0 : index
    %59 = vector.load %arg3[%c0_86, %c1_87, %c9_88, %c0_89] : memref<1x4x90x4xf32, #tpu.memory_space<vmem>>, vector<1x1x72x4xf32>
    %60 = vector.shape_cast %59 : vector<1x1x72x4xf32> to vector<72x4xf32>
    %c0_90 = arith.constant 0 : index
    %c0_91 = arith.constant 0 : index
    %61 = vector.load %arg7[%c0_90, %c0_91] : memref<72x128xf32, #tpu.memory_space<vmem>>, vector<72x128xf32>
    %c2_92 = arith.constant 2 : index
    %c1_93 = arith.constant 1 : index
    %c0_94 = arith.constant 0 : index
    %c0_95 = arith.constant 0 : index
    %62 = vector.load %arg4[%c2_92, %c1_93, %c0_94, %c0_95] : memref<3x3x4x128xf32, #tpu.memory_space<vmem>>, vector<1x1x4x128xf32>
    %63 = vector.shape_cast %62 : vector<1x1x4x128xf32> to vector<4x128xf32>
    %cst_96 = arith.constant dense<0.000000e+00> : vector<72x128xf32>
    %64 = tpu.matmul %60, %63, %cst_96 {dimension_numbers = #tpu.dot_dimension_numbers<[1], [0], [0], [1], [0, 0, 1, 1], [], []>} : vector<72x4xf32>, vector<4x128xf32>, vector<72x128xf32> -> vector<72x128xf32>
    %65 = arith.addf %61, %64 : vector<72x128xf32>
    %c0_97 = arith.constant 0 : index
    %c0_98 = arith.constant 0 : index
    %66 = vector.load %arg7[%c0_97, %c0_98] : memref<72x128xf32, #tpu.memory_space<vmem>>, vector<72x128xf32>
    tpu.vector_store %arg7[%c0_97, %c0_98], %65 {strides = array<i32>} : memref<72x128xf32, #tpu.memory_space<vmem>>, vector<72x128xf32>,
    %c0_99 = arith.constant 0 : index
    %c0_100 = arith.constant 0 : index
    %c10 = arith.constant 10 : index
    %c0_101 = arith.constant 0 : index
    %67 = vector.load %arg3[%c0_99, %c0_100, %c10, %c0_101] : memref<1x4x90x4xf32, #tpu.memory_space<vmem>>, vector<1x1x72x4xf32>
    %68 = vector.shape_cast %67 : vector<1x1x72x4xf32> to vector<72x4xf32>
    %c0_102 = arith.constant 0 : index
    %c0_103 = arith.constant 0 : index
    %69 = vector.load %arg7[%c0_102, %c0_103] : memref<72x128xf32, #tpu.memory_space<vmem>>, vector<72x128xf32>
    %c2_104 = arith.constant 2 : index
    %c2_105 = arith.constant 2 : index
    %c0_106 = arith.constant 0 : index
    %c0_107 = arith.constant 0 : index
    %70 = vector.load %arg4[%c2_104, %c2_105, %c0_106, %c0_107] : memref<3x3x4x128xf32, #tpu.memory_space<vmem>>, vector<1x1x4x128xf32>
    %71 = vector.shape_cast %70 : vector<1x1x4x128xf32> to vector<4x128xf32>
    %cst_108 = arith.constant dense<0.000000e+00> : vector<72x128xf32>
    %72 = tpu.matmul %68, %71, %cst_108 {dimension_numbers = #tpu.dot_dimension_numbers<[1], [0], [0], [1], [0, 0, 1, 1], [], []>} : vector<72x4xf32>, vector<4x128xf32>, vector<72x128xf32> -> vector<72x128xf32>
    %73 = arith.addf %69, %72 : vector<72x128xf32>
    %c0_109 = arith.constant 0 : index
    %c0_110 = arith.constant 0 : index
    %74 = vector.load %arg7[%c0_109, %c0_110] : memref<72x128xf32, #tpu.memory_space<vmem>>, vector<72x128xf32>
    tpu.vector_store %arg7[%c0_109, %c0_110], %73 {strides = array<i32>} : memref<72x128xf32, #tpu.memory_space<vmem>>, vector<72x128xf32>,
    %c0_i32_111 = arith.constant 0 : i32
    %75 = arith.cmpi eq, %arg2, %c0_i32_111 : i32
    %76 = arith.extui %75 : i1 to i32
    %c0_i32_112 = arith.constant 0 : i32
    %77 = arith.cmpi ne, %76, %c0_i32_112 : i32
    scf.if %77 {
      %c0_113 = arith.constant 0 : index
      %c0_114 = arith.constant 0 : index
      %78 = vector.load %arg7[%c0_113, %c0_114] : memref<72x128xf32, #tpu.memory_space<vmem>>, vector<72x128xf32>
      %c0_115 = arith.constant 0 : index
      %c0_116 = arith.constant 0 : index
      %79 = vector.load %arg5[%c0_115, %c0_116] : memref<1x128xf32, #tpu.memory_space<vmem>>, vector<1x128xf32>
      %80 = vector.broadcast %79 : vector<1x128xf32> to vector<72x128xf32>
      %81 = arith.addf %78, %80 : vector<72x128xf32>
      %c0_117 = arith.constant 0 : index
      %c0_118 = arith.constant 0 : index
      %c0_119 = arith.constant 0 : index
      %82 = vector.load %arg6[%c0_117, %c0_118, %c0_119] : memref<1x72x128xf32, #tpu.memory_space<vmem>>, vector<1x72x128xf32>
      %83 = vector.shape_cast %82 : vector<1x72x128xf32> to vector<72x128xf32>
      %84 = vector.shape_cast %81 : vector<72x128xf32> to vector<1x72x128xf32>
      tpu.vector_store %arg6[%c0_117, %c0_118, %c0_119], %84 {strides = array<i32>} : memref<1x72x128xf32, #tpu.memory_space<vmem>>, vector<1x72x128xf32>,
    } else {
    }
    return
  }
  func.func @transform_0(%arg0: i32, %arg1: i32, %arg2: i32) -> (i32, i32, i32, i32) {
    %c0_i32 = arith.constant 0 : i32
    %c0_i32_0 = arith.constant 0 : i32
    %c0_i32_1 = arith.constant 0 : i32
    return %arg0, %c0_i32, %c0_i32_0, %arg2 : i32, i32, i32, i32
  }
  func.func @transform_1(%arg0: i32, %arg1: i32, %arg2: i32) -> (i32, i32, i32, i32) {
    %c0_i32 = arith.constant 0 : i32
    %c0_i32_0 = arith.constant 0 : i32
    %c0_i32_1 = arith.constant 0 : i32
    return %c0_i32, %c0_i32_0, %arg2, %arg1 : i32, i32, i32, i32
  }
  func.func @transform_2(%arg0: i32, %arg1: i32, %arg2: i32) -> (i32, i32) {
    %c0_i32 = arith.constant 0 : i32
    %c0_i32_0 = arith.constant 0 : i32
    return %c0_i32, %arg1 : i32, i32
  }
  func.func @transform_3(%arg0: i32, %arg1: i32, %arg2: i32) -> (i32, i32, i32) {
    %c0_i32 = arith.constant 0 : i32
    %c0_i32_0 = arith.constant 0 : i32
    return %arg0, %c0_i32, %arg1 : i32, i32, i32
  }
}

</mosaic_0001>

<llo_original>
// kernel: tpu_custom_call.1
$region0: #{tpu_custom_call.1}
  #allocation0 [shape = 'u32[]', space=smem, size = 0x4, offset = 0x4, fixed_abs, tag = 'smem constant byte address 0x4 - core index']
  #allocation1 [shape = 'u32[72,128]{1,0:T(1,128)}', space=vmem, size = 0x9000, scoped, tag = 'internal scratch']
  #allocation2 [shape = 'f32[72,128]{1,0:T(8,128)}', space=vmem, size = 0x9000, scoped, tag = 'scratch operand']
  %s0 = inlined_call_operand.vmem [shape: f32[2,4,90,4], index: 0, kind: input, shape index: {}]
  %s1 = inlined_call_operand.vmem [shape: f32[3,3,4,128], index: 1, kind: input, shape index: {}]
  %s2 = inlined_call_operand.vmem [shape: f32[1,128], index: 2, kind: input, shape index: {}]
  %s3 = inlined_call_operand.hbm [shape: f32[2,72,128], index: 3, kind: output, shape index: {}]
  %s4 = sld [smem:[#allocation0]]
  $region53: #{tpu_custom_call.1} parent=0
    _
  %s6 = ssub.s32 1, %s4
  %s7 = scalar_select 0, %s6, %s4
  $region1: #{tpu_custom_call.1} parent=0
    #allocation3 [shape = 'u8[73728]{0}', space=vmem, size = 0x12000, scoped, tag = 'output window, operand 0']
    #allocation4 [shape = 's32[2]{0}', space=sflag, size = 0x8, scoped, tag = 'scoped memory for tpu_custom_call.1']
    %8 = vsyncpa [#allocation4], 0
    %s9 = scalar_lea.sflag [#allocation4], 1
    %10 = vsyncpa %s9, 0
    loop: start=0, step=1, limit=4
    $region2: #{tpu_custom_call.1} parent=1 // loop_pre_header
      _
    $region3: #{tpu_custom_call.1} parent=1 // loop_header
      %s12 = sphi 0, %s16
      %p13 = scmp.ge.s32.totalorder %s12, 4
      %s19 = sphi 0, %s38
      %s20 = sphi 0, %s34
      %s21 = sphi 0, %s30
      %s22 = sphi 0, %s19
      %s23 = sphi 0, %s20
      %s24 = sphi 0, %s21
      %s25 = sphi 0, %s22
      %s26 = sphi 0, %s23
      %s27 = sphi 0, %s24
      %s43 = sphi 0, %s45
      %s46 = sphi 0, %s43
      %s47 = sphi 0, %s46
      %s63 = sphi 0, %s47
      %s71 = sphi 0, %s73
      %s74 = sphi 0, %s71
      %s75 = sphi 0, %s74
      %s91 = sphi 0, %s75
      %s97 = sphi 0, %s99
      %s100 = sphi 0, %s97
      %s101 = sphi 0, %s100
      %s117 = sphi 0, %s101
      %s125 = sphi 0, %s127
      %s128 = sphi 0, %s125
      %s129 = sphi 0, %s128
      %s145 = sphi 0, %s129
    $region4: #{tpu_custom_call.1} parent=1 // loop_header_branch
      %15 = sbr.rel (%p13) target = $region8
    $region5: #{tpu_custom_call.1} parent=1 // loop_body
      %s17 = ssub.s32 %s12, 1
      %s18 = ssub.s32 %s12, 2
      %s28 = sadd.s32 1, %s21
      %p29 = scmp.ge.s32.totalorder %s28, 1
      %s30 = scalar_select %p29, 0, %s28
      %s31 = sadd.s32 1, %s20
      %s32 = scalar_select %p29, %s31, %s20
      %p33 = scmp.ge.s32.totalorder %s32, 1
      %s34 = scalar_select %p33, 0, %s32
      %s35 = sadd.s32 1, %s19
      %s36 = scalar_select %p33, %s35, %s19
      %p37 = scmp.ge.s32.totalorder %s36, 2
      %s38 = scalar_select %p37, 0, %s36
      %s39 = ssub.s32 %s19, %s38
      %s40 = ssub.s32 %s21, %s30
      %s41 = sor.u32 %s39, %s40
      %p42 = scmp.eq.s32.totalorder %s41, 0
      %s44 = sadd.s32 %s43, 1
      %s45 = scalar_select %p42, %s43, %s44
      %p48 = pneg %p42
      %p49 = scmp.eq.s32.totalorder %s12, 1
      %p50 = por %p48, %p49
      %p51 = scmp.ne.s32.totalorder %s43, %s46
      %p52 = scmp.eq.s32.totalorder %s12, 0
      %p53 = por %p51, %p52
      %p54 = scmp.ne.s32.totalorder %s43, %s46
      %p55 = scmp.eq.s32.totalorder %s17, 1
      %p56 = por %p54, %p55
      %p57 = scmp.ne.s32.totalorder %s46, %s47
      %p58 = scmp.eq.s32.totalorder %s17, 0
      %p59 = por %p57, %p58
      %p60 = scmp.ne.s32.totalorder %s46, %s47
      %p61 = scmp.eq.s32.totalorder %s18, 1
      %p62 = por %p60, %p61
      %p64 = scmp.ne.s32.totalorder %s47, %s63
      %p65 = scmp.eq.s32.totalorder %s18, 0
      %p66 = por %p64, %p65
      %s67 = ssub.s32 %s21, %s30
      %s68 = ssub.s32 %s20, %s34
      %s69 = sor.u32 %s67, %s68
      %p70 = scmp.eq.s32.totalorder %s69, 0
      %s72 = sadd.s32 %s71, 1
      %s73 = scalar_select %p70, %s71, %s72
      %p76 = pneg %p70
      %p77 = scmp.eq.s32.totalorder %s12, 1
      %p78 = por %p76, %p77
      %p79 = scmp.ne.s32.totalorder %s71, %s74
      %p80 = scmp.eq.s32.totalorder %s12, 0
      %p81 = por %p79, %p80
      %p82 = scmp.ne.s32.totalorder %s71, %s74
      %p83 = scmp.eq.s32.totalorder %s17, 1
      %p84 = por %p82, %p83
      %p85 = scmp.ne.s32.totalorder %s74, %s75
      %p86 = scmp.eq.s32.totalorder %s17, 0
      %p87 = por %p85, %p86
      %p88 = scmp.ne.s32.totalorder %s74, %s75
      %p89 = scmp.eq.s32.totalorder %s18, 1
      %p90 = por %p88, %p89
      %p92 = scmp.ne.s32.totalorder %s75, %s91
      %p93 = scmp.eq.s32.totalorder %s18, 0
      %p94 = por %p92, %p93
      %s95 = ssub.s32 %s20, %s34
      %p96 = scmp.eq.s32.totalorder %s95, 0
      %s98 = sadd.s32 %s97, 1
      %s99 = scalar_select %p96, %s97, %s98
      %p102 = pneg %p96
      %p103 = scmp.eq.s32.totalorder %s12, 1
      %p104 = por %p102, %p103
      %p105 = scmp.ne.s32.totalorder %s97, %s100
      %p106 = scmp.eq.s32.totalorder %s12, 0
      %p107 = por %p105, %p106
      %p108 = scmp.ne.s32.totalorder %s97, %s100
      %p109 = scmp.eq.s32.totalorder %s17, 1
      %p110 = por %p108, %p109
      %p111 = scmp.ne.s32.totalorder %s100, %s101
      %p112 = scmp.eq.s32.totalorder %s17, 0
      %p113 = por %p111, %p112
      %p114 = scmp.ne.s32.totalorder %s100, %s101
      %p115 = scmp.eq.s32.totalorder %s18, 1
      %p116 = por %p114, %p115
      %p118 = scmp.ne.s32.totalorder %s101, %s117
      %p119 = scmp.eq.s32.totalorder %s18, 0
      %p120 = por %p118, %p119
      %s121 = ssub.s32 %s19, %s38
      %s122 = ssub.s32 %s20, %s34
      %s123 = sor.u32 %s121, %s122
      %p124 = scmp.eq.s32.totalorder %s123, 0
      %s126 = sadd.s32 %s125, 1
      %s127 = scalar_select %p124, %s125, %s126
      %p130 = pneg %p124
      %p131 = scmp.eq.s32.totalorder %s12, 1
      %p132 = por %p130, %p131
      %p133 = scmp.ne.s32.totalorder %s125, %s128
      %p134 = scmp.eq.s32.totalorder %s12, 0
      %p135 = por %p133, %p134
      %p136 = scmp.ne.s32.totalorder %s125, %s128
      %p137 = scmp.eq.s32.totalorder %s17, 1
      %p138 = por %p136, %p137
      %p139 = scmp.ne.s32.totalorder %s128, %s129
      %p140 = scmp.eq.s32.totalorder %s17, 0
      %p141 = por %p139, %p140
      %p142 = scmp.ne.s32.totalorder %s128, %s129
      %p143 = scmp.eq.s32.totalorder %s18, 1
      %p144 = por %p142, %p143
      %p146 = scmp.ne.s32.totalorder %s129, %s145
      %p147 = scmp.eq.s32.totalorder %s18, 0
      %p148 = por %p146, %p147
      %p149 = scmp.le.s32.totalorder 1, %s12
      %p150 = scmp.lt.s32.totalorder %s12, 3
      %p151 = pnand %p149, %p150
      %p152 = pneg %p151
      // Predicated region
      $region9: #{tpu_custom_call.1} parent=5 // pred_check
        _
      $region10: #{tpu_custom_call.1} parent=5 // pred_check_branch
        %154 = sbr.rel (%p151) target = $region12
      $region11: #{tpu_custom_call.1} parent=5 // pred_region
        %s155 = ssub.s32 %s12, 1
        // Predicated region
        $region13: #{tpu_custom_call.1} parent=11 // pred_check
          %p156 = pneg %p87
        $region14: #{tpu_custom_call.1} parent=11 // pred_check_branch
          %158 = sbr.rel (%p156) target = $region16
        $region15: #{tpu_custom_call.1} parent=11 // pred_region
          %p159 = scmp.lt.s32.totalorder %s24, 0
          %s160 = scalar_select %p159, %s24, 0
          %p161 = scmp.lt.s32.totalorder %s23, 0
          %s162 = scalar_select %p161, %s23, 0
          %s163 = sadd.s32 %s162, %s160
          %s164 = smul.addr %s163, 4
          %s165 = scalar_lea.vmem %s1, %s164
        $region16: #{tpu_custom_call.1} parent=11 // pred_fallthru
          _
        // Predicated region
        $region17: #{tpu_custom_call.1} parent=11 // pred_check
          %p166 = pneg %p113
        $region18: #{tpu_custom_call.1} parent=11 // pred_check_branch
          %168 = sbr.rel (%p166) target = $region20
        $region19: #{tpu_custom_call.1} parent=11 // pred_region
          %p169 = scmp.lt.s32.totalorder %s23, 0
          %s170 = scalar_select %p169, %s23, 0
          %s171 = scalar_lea.vmem %s2, %s170
        $region20: #{tpu_custom_call.1} parent=11 // pred_fallthru
          _
      $region12: #{tpu_custom_call.1} parent=5 // pred_fallthru
        _
      %p172 = scmp.lt.s32.totalorder %s12, 2
      // Predicated region
      $region21: #{tpu_custom_call.1} parent=5 // pred_check
        %p173 = pneg %p172
      $region22: #{tpu_custom_call.1} parent=5 // pred_check_branch
        %175 = sbr.rel (%p173) target = $region24
      $region23: #{tpu_custom_call.1} parent=5 // pred_region
        // Predicated region
        $region25: #{tpu_custom_call.1} parent=23 // pred_check
          %p176 = pneg %p53
        $region26: #{tpu_custom_call.1} parent=23 // pred_check_branch
          %178 = sbr.rel (%p176) target = $region28
        $region27: #{tpu_custom_call.1} parent=23 // pred_region
          %p179 = scmp.lt.s32.totalorder %s19, 1
          %s180 = scalar_select %p179, %s19, 1
          %p181 = scmp.lt.s32.totalorder %s21, 0
          %s182 = scalar_select %p181, %s21, 0
          %s183 = smul.addr %s180, 48
          %s184 = sadd.s32 %s182, %s183
          %s185 = smul.addr %s184, 8
          %s186 = scalar_lea.vmem %s0, %s185
        $region28: #{tpu_custom_call.1} parent=23 // pred_fallthru
          _
      $region24: #{tpu_custom_call.1} parent=5 // pred_fallthru
        _
      %p187 = scmp.le.s32.totalorder 1, %s12
      %p188 = scmp.lt.s32.totalorder %s12, 3
      %p189 = pnand %p187, %p188
      %p190 = pneg %p189
      // Predicated region
      $region29: #{tpu_custom_call.1} parent=5 // pred_check
        _
      $region30: #{tpu_custom_call.1} parent=5 // pred_check_branch
        %192 = sbr.rel (%p189) target = $region32
      $region31: #{tpu_custom_call.1} parent=5 // pred_region
        %s193 = ssub.s32 %s12, 1
        %p194 = scmp.lt.s32.totalorder %s22, 1
        %s195 = scalar_select %p194, %s22, 1
        %p196 = scmp.lt.s32.totalorder %s24, 0
        %s197 = scalar_select %p196, %s24, 0
        %s198 = smul.addr %s195, 48
        %s199 = sadd.s32 %s197, %s198
        %s200 = smul.addr %s199, 8
        %s201 = scalar_lea.vmem %s0, %s200
        %p202 = pneg %p59
        %p203 = pneg %p56
        %p204 = scmp.lt.s32.totalorder %s24, 0
        %s205 = scalar_select %p204, %s24, 0
        %p206 = scmp.lt.s32.totalorder %s23, 0
        %s207 = scalar_select %p206, %s23, 0
        %s208 = sadd.s32 %s207, %s205
        %s209 = smul.addr %s208, 4
        %s210 = scalar_lea.vmem %s1, %s209
        %p211 = pneg %p87
        %p212 = pneg %p84
        %p213 = scmp.lt.s32.totalorder %s23, 0
        %s214 = scalar_select %p213, %s23, 0
        %s215 = scalar_lea.vmem %s2, %s214
        %p216 = pneg %p113
        %p217 = pneg %p110
        %p218 = pneg %p141
        %p219 = pneg %p138
        %s220 = sand.u32 %s128, 1
        %s221 = scalar_lea.sflag [#allocation4], %s220
        %s222 = sand.u32 %s128, 1
        %s223 = smul.addr %s222, 72
        %s224 = scalar_lea.vmem [#allocation3], %s223
        %p225 = scmp.lt.s32.totalorder %s22, 1
        %s226 = scalar_select %p225, %s22, 1
        %p227 = scmp.lt.s32.totalorder %s24, 0
        %s228 = scalar_select %p227, %s24, 0
        %s229 = smul.addr %s226, 48
        %s230 = sadd.s32 %s228, %s229
        %s231 = smul.addr %s230, 8
        %s232 = scalar_lea.vmem %s0, %s231
        %p233 = scmp.lt.s32.totalorder %s24, 0
        %s234 = scalar_select %p233, %s24, 0
        %p235 = scmp.lt.s32.totalorder %s23, 0
        %s236 = scalar_select %p235, %s23, 0
        %s237 = sadd.s32 %s236, %s234
        %s238 = smul.addr %s237, 4
        %s239 = scalar_lea.vmem %s1, %s238
        %p240 = scmp.lt.s32.totalorder %s23, 0
        %s241 = scalar_select %p240, %s23, 0
        %s242 = scalar_lea.vmem %s2, %s241
        %p243 = scmp.eq.s32.totalorder %s24, 0
        // Predicated region
        $region33: #{tpu_custom_call.1} parent=31 // pred_check
          %p244 = pneg %p243
        $region34: #{tpu_custom_call.1} parent=31 // pred_check_branch
          %246 = sbr.rel (%p244) target = $region36
        $region35: #{tpu_custom_call.1} parent=31 // pred_region
          %247 = vst [vmem:[#allocation2] sm:$0xff] 0.0
          %248 = vst [vmem:[#allocation2 + $0x8] sm:$0xff] 0.0
          %249 = vst [vmem:[#allocation2 + $0x10] sm:$0xff] 0.0
          %250 = vst [vmem:[#allocation2 + $0x18] sm:$0xff] 0.0
          %251 = vst [vmem:[#allocation2 + $0x20] sm:$0xff] 0.0
          %252 = vst [vmem:[#allocation2 + $0x28] sm:$0xff] 0.0
          %253 = vst [vmem:[#allocation2 + $0x30] sm:$0xff] 0.0
          %254 = vst [vmem:[#allocation2 + $0x38] sm:$0xff] 0.0
          %255 = vst [vmem:[#allocation2 + $0x40] sm:$0xff] 0.0
        $region36: #{tpu_custom_call.1} parent=31 // pred_fallthru
          _
        %v256 = vld [vmem:[%s232] sm:$0xff]
        %v257 = vld [vmem:[%s232 + $0x8] sm:$0xff]
        %v258 = vld [vmem:[%s232 + $0x10] sm:$0xff]
        %v259 = vld [vmem:[%s232 + $0x18] sm:$0xff]
        %v260 = vld [vmem:[%s232 + $0x20] sm:$0xff]
        %v261 = vld [vmem:[%s232 + $0x28] sm:$0xff]
        %v262 = vld [vmem:[%s232 + $0x30] sm:$0xff]
        %v263 = vld [vmem:[%s232 + $0x38] sm:$0xff]
        %v264 = vld [vmem:[%s232 + $0x40] sm:$0xff]
        %v265 = vld [vmem:[#allocation2] sm:$0xff]
        %v266 = vld [vmem:[#allocation2 + $0x8] sm:$0xff]
        %v267 = vld [vmem:[#allocation2 + $0x10] sm:$0xff]
        %v268 = vld [vmem:[#allocation2 + $0x18] sm:$0xff]
        %v269 = vld [vmem:[#allocation2 + $0x20] sm:$0xff]
        %v270 = vld [vmem:[#allocation2 + $0x28] sm:$0xff]
        %v271 = vld [vmem:[#allocation2 + $0x30] sm:$0xff]
        %v272 = vld [vmem:[#allocation2 + $0x38] sm:$0xff]
        %v273 = vld [vmem:[#allocation2 + $0x40] sm:$0xff]
        %v274 = vld [vmem:[%s239] sm:$0xf]
        %vm275 = vcmask 31744
        %v277 = vsel %vm275, %v256, 0
        %v280 = vsel %vm275, %v257, 0
        %v283 = vsel %vm275, %v258, 0
        %v286 = vsel %vm275, %v259, 0
        %v289 = vsel %vm275, %v260, 0
        %v292 = vsel %vm275, %v261, 0
        %v295 = vsel %vm275, %v262, 0
        %v298 = vsel %vm275, %v263, 0
        %v301 = vsel %vm275, %v264, 0
        %vm303 = vcmask 1043456
        %v305 = vsel %vm303, %v274, 0
        %307 = vmatpush.msra.mxu0 0.0
        %308 = vmatpush.msra.mxu0 0.0
        %309 = vmatpush.msra.mxu0 0.0
        %310 = vmatpush.msra.mxu0 0.0
        %311 = vmatpush.msra.mxu0 0.0
        %312 = vmatpush.msra.mxu0 0.0
        %313 = vmatpush.msra.mxu0 0.0
        %314 = vmatpush.msra.mxu0 0.0
        %315 = vmatpush.msra.mxu0 0.0
        %316 = vmatpush.msra.mxu0 0.0
        %317 = vmatpush.msra.mxu0 0.0
        %318 = vmatpush.msra.mxu0 0.0
        %319 = vmatpush.msra.mxu0 0.0
        %320 = vmatpush.msra.mxu0 0.0
        %321 = vmatpush.msra.mxu0 0.0
        %322 = vmatpush.msra.mxu0 %v305
        %323 = vmatmul.f32.gmra.mxu0 %v277
        %v324 = vpop.f32.mrf.mxu0
        %v325 = vadd.f32 0.0, %v324
        %326 = vmatmul.f32.gmra.mxu0 %v280
        %v327 = vpop.f32.mrf.mxu0
        %v328 = vadd.f32 0.0, %v327
        %329 = vmatmul.f32.gmra.mxu0 %v283
        %v330 = vpop.f32.mrf.mxu0
        %v331 = vadd.f32 0.0, %v330
        %332 = vmatmul.f32.gmra.mxu0 %v286
        %v333 = vpop.f32.mrf.mxu0
        %v334 = vadd.f32 0.0, %v333
        %335 = vmatmul.f32.gmra.mxu0 %v289
        %v336 = vpop.f32.mrf.mxu0
        %v337 = vadd.f32 0.0, %v336
        %338 = vmatmul.f32.gmra.mxu0 %v292
        %v339 = vpop.f32.mrf.mxu0
        %v340 = vadd.f32 0.0, %v339
        %341 = vmatmul.f32.gmra.mxu0 %v295
        %v342 = vpop.f32.mrf.mxu0
        %v343 = vadd.f32 0.0, %v342
        %344 = vmatmul.f32.gmra.mxu0 %v298
        %v345 = vpop.f32.mrf.mxu0
        %v346 = vadd.f32 0.0, %v345
        %347 = vmatmul.f32.gmra.mxu0 %v301
        %v348 = vpop.f32.mrf.mxu0
        %v349 = vadd.f32 0.0, %v348
        %350 = vdwg.mxu0
        %v351 = vadd.f32 %v265, %v325
        %v352 = vadd.f32 %v266, %v328
        %v353 = vadd.f32 %v267, %v331
        %v354 = vadd.f32 %v268, %v334
        %v355 = vadd.f32 %v269, %v337
        %v356 = vadd.f32 %v270, %v340
        %v357 = vadd.f32 %v271, %v343
        %v358 = vadd.f32 %v272, %v346
        %v359 = vadd.f32 %v273, %v349
        %360 = vst [vmem:[#allocation2] sm:$0xff] %v351
        %361 = vst [vmem:[#allocation2 + $0x8] sm:$0xff] %v352
        %362 = vst [vmem:[#allocation2 + $0x10] sm:$0xff] %v353
        %363 = vst [vmem:[#allocation2 + $0x18] sm:$0xff] %v354
        %364 = vst [vmem:[#allocation2 + $0x20] sm:$0xff] %v355
        %365 = vst [vmem:[#allocation2 + $0x28] sm:$0xff] %v356
        %366 = vst [vmem:[#allocation2 + $0x30] sm:$0xff] %v357
        %367 = vst [vmem:[#allocation2 + $0x38] sm:$0xff] %v358
        %368 = vst [vmem:[#allocation2 + $0x40] sm:$0xff] %v359
        %s369 = scalar_lea.vmem %s232, 96
        %v370 = vld [vmem:[%s369] sm:$0xff]
        %v371 = vld [vmem:[%s369 + $0x8] sm:$0xff]
        %v372 = vld [vmem:[%s369 + $0x10] sm:$0xff]
        %v373 = vld [vmem:[%s369 + $0x18] sm:$0xff]
        %v374 = vld [vmem:[%s369 + $0x20] sm:$0xff]
        %v375 = vld [vmem:[%s369 + $0x28] sm:$0xff]
        %v376 = vld [vmem:[%s369 + $0x30] sm:$0xff]
        %v377 = vld [vmem:[%s369 + $0x38] sm:$0xff]
        %v378 = vld [vmem:[%s369 + $0x40] sm:$0xff]
        %v379 = vld [vmem:[#allocation2] sm:$0xff]
        %v380 = vld [vmem:[#allocation2 + $0x8] sm:$0xff]
        %v381 = vld [vmem:[#allocation2 + $0x10] sm:$0xff]
        %v382 = vld [vmem:[#allocation2 + $0x18] sm:$0xff]
        %v383 = vld [vmem:[#allocation2 + $0x20] sm:$0xff]
        %v384 = vld [vmem:[#allocation2 + $0x28] sm:$0xff]
        %v385 = vld [vmem:[#allocation2 + $0x30] sm:$0xff]
        %v386 = vld [vmem:[#allocation2 + $0x38] sm:$0xff]
        %v387 = vld [vmem:[#allocation2 + $0x40] sm:$0xff]
        %s388 = scalar_lea.vmem %s239, 4
        %v389 = vld [vmem:[%s388] sm:$0xf]
        %v391 = vsel %vm275, %v370, 0
        %v394 = vsel %vm275, %v371, 0
        %v397 = vsel %vm275, %v372, 0
        %v400 = vsel %vm275, %v373, 0
        %v403 = vsel %vm275, %v374, 0
        %v406 = vsel %vm275, %v375, 0
        %v409 = vsel %vm275, %v376, 0
        %v412 = vsel %vm275, %v377, 0
        %v415 = vsel %vm275, %v378, 0
        %v418 = vsel %vm303, %v389, 0
        %420 = vmatpush.msra.mxu0 0.0
        %421 = vmatpush.msra.mxu0 0.0
        %422 = vmatpush.msra.mxu0 0.0
        %423 = vmatpush.msra.mxu0 0.0
        %424 = vmatpush.msra.mxu0 0.0
        %425 = vmatpush.msra.mxu0 0.0
        %426 = vmatpush.msra.mxu0 0.0
        %427 = vmatpush.msra.mxu0 0.0
        %428 = vmatpush.msra.mxu0 0.0
        %429 = vmatpush.msra.mxu0 0.0
        %430 = vmatpush.msra.mxu0 0.0
        %431 = vmatpush.msra.mxu0 0.0
        %432 = vmatpush.msra.mxu0 0.0
        %433 = vmatpush.msra.mxu0 0.0
        %434 = vmatpush.msra.mxu0 0.0
        %435 = vmatpush.msra.mxu0 %v418
        %436 = vmatmul.f32.gmra.mxu0 %v391
        %v437 = vpop.f32.mrf.mxu0
        %v438 = vadd.f32 0.0, %v437
        %439 = vmatmul.f32.gmra.mxu0 %v394
        %v440 = vpop.f32.mrf.mxu0
        %v441 = vadd.f32 0.0, %v440
        %442 = vmatmul.f32.gmra.mxu0 %v397
        %v443 = vpop.f32.mrf.mxu0
        %v444 = vadd.f32 0.0, %v443
        %445 = vmatmul.f32.gmra.mxu0 %v400
        %v446 = vpop.f32.mrf.mxu0
        %v447 = vadd.f32 0.0, %v446
        %448 = vmatmul.f32.gmra.mxu0 %v403
        %v449 = vpop.f32.mrf.mxu0
        %v450 = vadd.f32 0.0, %v449
        %451 = vmatmul.f32.gmra.mxu0 %v406
        %v452 = vpop.f32.mrf.mxu0
        %v453 = vadd.f32 0.0, %v452
        %454 = vmatmul.f32.gmra.mxu0 %v409
        %v455 = vpop.f32.mrf.mxu0
        %v456 = vadd.f32 0.0, %v455
        %457 = vmatmul.f32.gmra.mxu0 %v412
        %v458 = vpop.f32.mrf.mxu0
        %v459 = vadd.f32 0.0, %v458
        %460 = vmatmul.f32.gmra.mxu0 %v415
        %v461 = vpop.f32.mrf.mxu0
        %v462 = vadd.f32 0.0, %v461
        %463 = vdwg.mxu0
        %v464 = vadd.f32 %v379, %v438
        %v465 = vadd.f32 %v380, %v441
        %v466 = vadd.f32 %v381, %v444
        %v467 = vadd.f32 %v382, %v447
        %v468 = vadd.f32 %v383, %v450
        %v469 = vadd.f32 %v384, %v453
        %v470 = vadd.f32 %v385, %v456
        %v471 = vadd.f32 %v386, %v459
        %v472 = vadd.f32 %v387, %v462
        %473 = vst [vmem:[#allocation2] sm:$0xff] %v464
        %474 = vst [vmem:[#allocation2 + $0x8] sm:$0xff] %v465
        %475 = vst [vmem:[#allocation2 + $0x10] sm:$0xff] %v466
        %476 = vst [vmem:[#allocation2 + $0x18] sm:$0xff] %v467
        %477 = vst [vmem:[#allocation2 + $0x20] sm:$0xff] %v468
        %478 = vst [vmem:[#allocation2 + $0x28] sm:$0xff] %v469
        %479 = vst [vmem:[#allocation2 + $0x30] sm:$0xff] %v470
        %480 = vst [vmem:[#allocation2 + $0x38] sm:$0xff] %v471
        %481 = vst [vmem:[#allocation2 + $0x40] sm:$0xff] %v472
        %v482 = vld [vmem:[%s232 + $0x1] sm:$0xff]
        %v483 = vld [vmem:[%s232 + $0x9] sm:$0xff]
        %v484 = vld [vmem:[%s232 + $0x11] sm:$0xff]
        %v485 = vld [vmem:[%s232 + $0x19] sm:$0xff]
        %v486 = vld [vmem:[%s232 + $0x21] sm:$0xff]
        %v487 = vld [vmem:[%s232 + $0x29] sm:$0xff]
        %v488 = vld [vmem:[%s232 + $0x31] sm:$0xff]
        %v489 = vld [vmem:[%s232 + $0x39] sm:$0xff]
        %v490 = vld [vmem:[%s232 + $0x41] sm:$0xff]
        %v491 = vld [vmem:[#allocation2] sm:$0xff]
        %v492 = vld [vmem:[#allocation2 + $0x8] sm:$0xff]
        %v493 = vld [vmem:[#allocation2 + $0x10] sm:$0xff]
        %v494 = vld [vmem:[#allocation2 + $0x18] sm:$0xff]
        %v495 = vld [vmem:[#allocation2 + $0x20] sm:$0xff]
        %v496 = vld [vmem:[#allocation2 + $0x28] sm:$0xff]
        %v497 = vld [vmem:[#allocation2 + $0x30] sm:$0xff]
        %v498 = vld [vmem:[#allocation2 + $0x38] sm:$0xff]
        %v499 = vld [vmem:[#allocation2 + $0x40] sm:$0xff]
        %s500 = scalar_lea.vmem %s239, 8
        %v501 = vld [vmem:[%s500] sm:$0xf]
        %v503 = vsel %vm275, %v482, 0
        %v506 = vsel %vm275, %v483, 0
        %v509 = vsel %vm275, %v484, 0
        %v512 = vsel %vm275, %v485, 0
        %v515 = vsel %vm275, %v486, 0
        %v518 = vsel %vm275, %v487, 0
        %v521 = vsel %vm275, %v488, 0
        %v524 = vsel %vm275, %v489, 0
        %v527 = vsel %vm275, %v490, 0
        %v530 = vsel %vm303, %v501, 0
        %532 = vmatpush.msra.mxu0 0.0
        %533 = vmatpush.msra.mxu0 0.0
        %534 = vmatpush.msra.mxu0 0.0
        %535 = vmatpush.msra.mxu0 0.0
        %536 = vmatpush.msra.mxu0 0.0
        %537 = vmatpush.msra.mxu0 0.0
        %538 = vmatpush.msra.mxu0 0.0
        %539 = vmatpush.msra.mxu0 0.0
        %540 = vmatpush.msra.mxu0 0.0
        %541 = vmatpush.msra.mxu0 0.0
        %542 = vmatpush.msra.mxu0 0.0
        %543 = vmatpush.msra.mxu0 0.0
        %544 = vmatpush.msra.mxu0 0.0
        %545 = vmatpush.msra.mxu0 0.0
        %546 = vmatpush.msra.mxu0 0.0
        %547 = vmatpush.msra.mxu0 %v530
        %548 = vmatmul.f32.gmra.mxu0 %v503
        %v549 = vpop.f32.mrf.mxu0
        %v550 = vadd.f32 0.0, %v549
        %551 = vmatmul.f32.gmra.mxu0 %v506
        %v552 = vpop.f32.mrf.mxu0
        %v553 = vadd.f32 0.0, %v552
        %554 = vmatmul.f32.gmra.mxu0 %v509
        %v555 = vpop.f32.mrf.mxu0
        %v556 = vadd.f32 0.0, %v555
        %557 = vmatmul.f32.gmra.mxu0 %v512
        %v558 = vpop.f32.mrf.mxu0
        %v559 = vadd.f32 0.0, %v558
        %560 = vmatmul.f32.gmra.mxu0 %v515
        %v561 = vpop.f32.mrf.mxu0
        %v562 = vadd.f32 0.0, %v561
        %563 = vmatmul.f32.gmra.mxu0 %v518
        %v564 = vpop.f32.mrf.mxu0
        %v565 = vadd.f32 0.0, %v564
        %566 = vmatmul.f32.gmra.mxu0 %v521
        %v567 = vpop.f32.mrf.mxu0
        %v568 = vadd.f32 0.0, %v567
        %569 = vmatmul.f32.gmra.mxu0 %v524
        %v570 = vpop.f32.mrf.mxu0
        %v571 = vadd.f32 0.0, %v570
        %572 = vmatmul.f32.gmra.mxu0 %v527
        %v573 = vpop.f32.mrf.mxu0
        %v574 = vadd.f32 0.0, %v573
        %575 = vdwg.mxu0
        %v576 = vadd.f32 %v491, %v550
        %v577 = vadd.f32 %v492, %v553
        %v578 = vadd.f32 %v493, %v556
        %v579 = vadd.f32 %v494, %v559
        %v580 = vadd.f32 %v495, %v562
        %v581 = vadd.f32 %v496, %v565
        %v582 = vadd.f32 %v497, %v568
        %v583 = vadd.f32 %v498, %v571
        %v584 = vadd.f32 %v499, %v574
        %585 = vst [vmem:[#allocation2] sm:$0xff] %v576
        %586 = vst [vmem:[#allocation2 + $0x8] sm:$0xff] %v577
        %587 = vst [vmem:[#allocation2 + $0x10] sm:$0xff] %v578
        %588 = vst [vmem:[#allocation2 + $0x18] sm:$0xff] %v579
        %589 = vst [vmem:[#allocation2 + $0x20] sm:$0xff] %v580
        %590 = vst [vmem:[#allocation2 + $0x28] sm:$0xff] %v581
        %591 = vst [vmem:[#allocation2 + $0x30] sm:$0xff] %v582
        %592 = vst [vmem:[#allocation2 + $0x38] sm:$0xff] %v583
        %593 = vst [vmem:[#allocation2 + $0x40] sm:$0xff] %v584
        %s594 = scalar_lea.vmem %s232, 192
        %v595 = vld [vmem:[%s594] sm:$0xff]
        %v596 = vld [vmem:[%s594 + $0x8] sm:$0xff]
        %v597 = vld [vmem:[%s594 + $0x10] sm:$0xff]
        %v598 = vld [vmem:[%s594 + $0x18] sm:$0xff]
        %v599 = vld [vmem:[%s594 + $0x20] sm:$0xff]
        %v600 = vld [vmem:[%s594 + $0x28] sm:$0xff]
        %v601 = vld [vmem:[%s594 + $0x30] sm:$0xff]
        %v602 = vld [vmem:[%s594 + $0x38] sm:$0xff]
        %v603 = vld [vmem:[%s594 + $0x40] sm:$0xff]
        %v604 = vld [vmem:[#allocation2] sm:$0xff]
        %v605 = vld [vmem:[#allocation2 + $0x8] sm:$0xff]
        %v606 = vld [vmem:[#allocation2 + $0x10] sm:$0xff]
        %v607 = vld [vmem:[#allocation2 + $0x18] sm:$0xff]
        %v608 = vld [vmem:[#allocation2 + $0x20] sm:$0xff]
        %v609 = vld [vmem:[#allocation2 + $0x28] sm:$0xff]
        %v610 = vld [vmem:[#allocation2 + $0x30] sm:$0xff]
        %v611 = vld [vmem:[#allocation2 + $0x38] sm:$0xff]
        %v612 = vld [vmem:[#allocation2 + $0x40] sm:$0xff]
        %s613 = scalar_lea.vmem %s239, 12
        %v614 = vld [vmem:[%s613] sm:$0xf]
        %v616 = vsel %vm275, %v595, 0
        %v619 = vsel %vm275, %v596, 0
        %v622 = vsel %vm275, %v597, 0
        %v625 = vsel %vm275, %v598, 0
        %v628 = vsel %vm275, %v599, 0
        %v631 = vsel %vm275, %v600, 0
        %v634 = vsel %vm275, %v601, 0
        %v637 = vsel %vm275, %v602, 0
        %v640 = vsel %vm275, %v603, 0
        %v643 = vsel %vm303, %v614, 0
        %645 = vmatpush.msra.mxu0 0.0
        %646 = vmatpush.msra.mxu0 0.0
        %647 = vmatpush.msra.mxu0 0.0
        %648 = vmatpush.msra.mxu0 0.0
        %649 = vmatpush.msra.mxu0 0.0
        %650 = vmatpush.msra.mxu0 0.0
        %651 = vmatpush.msra.mxu0 0.0
        %652 = vmatpush.msra.mxu0 0.0
        %653 = vmatpush.msra.mxu0 0.0
        %654 = vmatpush.msra.mxu0 0.0
        %655 = vmatpush.msra.mxu0 0.0
        %656 = vmatpush.msra.mxu0 0.0
        %657 = vmatpush.msra.mxu0 0.0
        %658 = vmatpush.msra.mxu0 0.0
        %659 = vmatpush.msra.mxu0 0.0
        %660 = vmatpush.msra.mxu0 %v643
        %661 = vmatmul.f32.gmra.mxu0 %v616
        %v662 = vpop.f32.mrf.mxu0
        %v663 = vadd.f32 0.0, %v662
        %664 = vmatmul.f32.gmra.mxu0 %v619
        %v665 = vpop.f32.mrf.mxu0
        %v666 = vadd.f32 0.0, %v665
        %667 = vmatmul.f32.gmra.mxu0 %v622
        %v668 = vpop.f32.mrf.mxu0
        %v669 = vadd.f32 0.0, %v668
        %670 = vmatmul.f32.gmra.mxu0 %v625
        %v671 = vpop.f32.mrf.mxu0
        %v672 = vadd.f32 0.0, %v671
        %673 = vmatmul.f32.gmra.mxu0 %v628
        %v674 = vpop.f32.mrf.mxu0
        %v675 = vadd.f32 0.0, %v674
        %676 = vmatmul.f32.gmra.mxu0 %v631
        %v677 = vpop.f32.mrf.mxu0
        %v678 = vadd.f32 0.0, %v677
        %679 = vmatmul.f32.gmra.mxu0 %v634
        %v680 = vpop.f32.mrf.mxu0
        %v681 = vadd.f32 0.0, %v680
        %682 = vmatmul.f32.gmra.mxu0 %v637
        %v683 = vpop.f32.mrf.mxu0
        %v684 = vadd.f32 0.0, %v683
        %685 = vmatmul.f32.gmra.mxu0 %v640
        %v686 = vpop.f32.mrf.mxu0
        %v687 = vadd.f32 0.0, %v686
        %688 = vdwg.mxu0
        %v689 = vadd.f32 %v604, %v663
        %v690 = vadd.f32 %v605, %v666
        %v691 = vadd.f32 %v606, %v669
        %v692 = vadd.f32 %v607, %v672
        %v693 = vadd.f32 %v608, %v675
        %v694 = vadd.f32 %v609, %v678
        %v695 = vadd.f32 %v610, %v681
        %v696 = vadd.f32 %v611, %v684
        %v697 = vadd.f32 %v612, %v687
        %698 = vst [vmem:[#allocation2] sm:$0xff] %v689
        %699 = vst [vmem:[#allocation2 + $0x8] sm:$0xff] %v690
        %700 = vst [vmem:[#allocation2 + $0x10] sm:$0xff] %v691
        %701 = vst [vmem:[#allocation2 + $0x18] sm:$0xff] %v692
        %702 = vst [vmem:[#allocation2 + $0x20] sm:$0xff] %v693
        %703 = vst [vmem:[#allocation2 + $0x28] sm:$0xff] %v694
        %704 = vst [vmem:[#allocation2 + $0x30] sm:$0xff] %v695
        %705 = vst [vmem:[#allocation2 + $0x38] sm:$0xff] %v696
        %706 = vst [vmem:[#allocation2 + $0x40] sm:$0xff] %v697
        %s707 = scalar_lea.vmem %s232, 288
        %v708 = vld [vmem:[%s707] sm:$0xff]
        %v709 = vld [vmem:[%s707 + $0x8] sm:$0xff]
        %v710 = vld [vmem:[%s707 + $0x10] sm:$0xff]
        %v711 = vld [vmem:[%s707 + $0x18] sm:$0xff]
        %v712 = vld [vmem:[%s707 + $0x20] sm:$0xff]
        %v713 = vld [vmem:[%s707 + $0x28] sm:$0xff]
        %v714 = vld [vmem:[%s707 + $0x30] sm:$0xff]
        %v715 = vld [vmem:[%s707 + $0x38] sm:$0xff]
        %v716 = vld [vmem:[%s707 + $0x40] sm:$0xff]
        %v717 = vld [vmem:[#allocation2] sm:$0xff]
        %v718 = vld [vmem:[#allocation2 + $0x8] sm:$0xff]
        %v719 = vld [vmem:[#allocation2 + $0x10] sm:$0xff]
        %v720 = vld [vmem:[#allocation2 + $0x18] sm:$0xff]
        %v721 = vld [vmem:[#allocation2 + $0x20] sm:$0xff]
        %v722 = vld [vmem:[#allocation2 + $0x28] sm:$0xff]
        %v723 = vld [vmem:[#allocation2 + $0x30] sm:$0xff]
        %v724 = vld [vmem:[#allocation2 + $0x38] sm:$0xff]
        %v725 = vld [vmem:[#allocation2 + $0x40] sm:$0xff]
        %s726 = scalar_lea.vmem %s239, 16
        %v727 = vld [vmem:[%s726] sm:$0xf]
        %v729 = vsel %vm275, %v708, 0
        %v732 = vsel %vm275, %v709, 0
        %v735 = vsel %vm275, %v710, 0
        %v738 = vsel %vm275, %v711, 0
        %v741 = vsel %vm275, %v712, 0
        %v744 = vsel %vm275, %v713, 0
        %v747 = vsel %vm275, %v714, 0
        %v750 = vsel %vm275, %v715, 0
        %v753 = vsel %vm275, %v716, 0
        %v756 = vsel %vm303, %v727, 0
        %758 = vmatpush.msra.mxu0 0.0
        %759 = vmatpush.msra.mxu0 0.0
        %760 = vmatpush.msra.mxu0 0.0
        %761 = vmatpush.msra.mxu0 0.0
        %762 = vmatpush.msra.mxu0 0.0
        %763 = vmatpush.msra.mxu0 0.0
        %764 = vmatpush.msra.mxu0 0.0
        %765 = vmatpush.msra.mxu0 0.0
        %766 = vmatpush.msra.mxu0 0.0
        %767 = vmatpush.msra.mxu0 0.0
        %768 = vmatpush.msra.mxu0 0.0
        %769 = vmatpush.msra.mxu0 0.0
        %770 = vmatpush.msra.mxu0 0.0
        %771 = vmatpush.msra.mxu0 0.0
        %772 = vmatpush.msra.mxu0 0.0
        %773 = vmatpush.msra.mxu0 %v756
        %774 = vmatmul.f32.gmra.mxu0 %v729
        %v775 = vpop.f32.mrf.mxu0
        %v776 = vadd.f32 0.0, %v775
        %777 = vmatmul.f32.gmra.mxu0 %v732
        %v778 = vpop.f32.mrf.mxu0
        %v779 = vadd.f32 0.0, %v778
        %780 = vmatmul.f32.gmra.mxu0 %v735
        %v781 = vpop.f32.mrf.mxu0
        %v782 = vadd.f32 0.0, %v781
        %783 = vmatmul.f32.gmra.mxu0 %v738
        %v784 = vpop.f32.mrf.mxu0
        %v785 = vadd.f32 0.0, %v784
        %786 = vmatmul.f32.gmra.mxu0 %v741
        %v787 = vpop.f32.mrf.mxu0
        %v788 = vadd.f32 0.0, %v787
        %789 = vmatmul.f32.gmra.mxu0 %v744
        %v790 = vpop.f32.mrf.mxu0
        %v791 = vadd.f32 0.0, %v790
        %792 = vmatmul.f32.gmra.mxu0 %v747
        %v793 = vpop.f32.mrf.mxu0
        %v794 = vadd.f32 0.0, %v793
        %795 = vmatmul.f32.gmra.mxu0 %v750
        %v796 = vpop.f32.mrf.mxu0
        %v797 = vadd.f32 0.0, %v796
        %798 = vmatmul.f32.gmra.mxu0 %v753
        %v799 = vpop.f32.mrf.mxu0
        %v800 = vadd.f32 0.0, %v799
        %801 = vdwg.mxu0
        %v802 = vadd.f32 %v717, %v776
        %v803 = vadd.f32 %v718, %v779
        %v804 = vadd.f32 %v719, %v782
        %v805 = vadd.f32 %v720, %v785
        %v806 = vadd.f32 %v721, %v788
        %v807 = vadd.f32 %v722, %v791
        %v808 = vadd.f32 %v723, %v794
        %v809 = vadd.f32 %v724, %v797
        %v810 = vadd.f32 %v725, %v800
        %811 = vst [vmem:[#allocation2] sm:$0xff] %v802
        %812 = vst [vmem:[#allocation2 + $0x8] sm:$0xff] %v803
        %813 = vst [vmem:[#allocation2 + $0x10] sm:$0xff] %v804
        %814 = vst [vmem:[#allocation2 + $0x18] sm:$0xff] %v805
        %815 = vst [vmem:[#allocation2 + $0x20] sm:$0xff] %v806
        %816 = vst [vmem:[#allocation2 + $0x28] sm:$0xff] %v807
        %817 = vst [vmem:[#allocation2 + $0x30] sm:$0xff] %v808
        %818 = vst [vmem:[#allocation2 + $0x38] sm:$0xff] %v809
        %819 = vst [vmem:[#allocation2 + $0x40] sm:$0xff] %v810
        %v820 = vld [vmem:[%s594 + $0x1] sm:$0xff]
        %v821 = vld [vmem:[%s594 + $0x9] sm:$0xff]
        %v822 = vld [vmem:[%s594 + $0x11] sm:$0xff]
        %v823 = vld [vmem:[%s594 + $0x19] sm:$0xff]
        %v824 = vld [vmem:[%s594 + $0x21] sm:$0xff]
        %v825 = vld [vmem:[%s594 + $0x29] sm:$0xff]
        %v826 = vld [vmem:[%s594 + $0x31] sm:$0xff]
        %v827 = vld [vmem:[%s594 + $0x39] sm:$0xff]
        %v828 = vld [vmem:[%s594 + $0x41] sm:$0xff]
        %v829 = vld [vmem:[#allocation2] sm:$0xff]
        %v830 = vld [vmem:[#allocation2 + $0x8] sm:$0xff]
        %v831 = vld [vmem:[#allocation2 + $0x10] sm:$0xff]
        %v832 = vld [vmem:[#allocation2 + $0x18] sm:$0xff]
        %v833 = vld [vmem:[#allocation2 + $0x20] sm:$0xff]
        %v834 = vld [vmem:[#allocation2 + $0x28] sm:$0xff]
        %v835 = vld [vmem:[#allocation2 + $0x30] sm:$0xff]
        %v836 = vld [vmem:[#allocation2 + $0x38] sm:$0xff]
        %v837 = vld [vmem:[#allocation2 + $0x40] sm:$0xff]
        %s838 = scalar_lea.vmem %s239, 20
        %v839 = vld [vmem:[%s838] sm:$0xf]
        %v841 = vsel %vm275, %v820, 0
        %v844 = vsel %vm275, %v821, 0
        %v847 = vsel %vm275, %v822, 0
        %v850 = vsel %vm275, %v823, 0
        %v853 = vsel %vm275, %v824, 0
        %v856 = vsel %vm275, %v825, 0
        %v859 = vsel %vm275, %v826, 0
        %v862 = vsel %vm275, %v827, 0
        %v865 = vsel %vm275, %v828, 0
        %v868 = vsel %vm303, %v839, 0
        %870 = vmatpush.msra.mxu0 0.0
        %871 = vmatpush.msra.mxu0 0.0
        %872 = vmatpush.msra.mxu0 0.0
        %873 = vmatpush.msra.mxu0 0.0
        %874 = vmatpush.msra.mxu0 0.0
        %875 = vmatpush.msra.mxu0 0.0
        %876 = vmatpush.msra.mxu0 0.0
        %877 = vmatpush.msra.mxu0 0.0
        %878 = vmatpush.msra.mxu0 0.0
        %879 = vmatpush.msra.mxu0 0.0
        %880 = vmatpush.msra.mxu0 0.0
        %881 = vmatpush.msra.mxu0 0.0
        %882 = vmatpush.msra.mxu0 0.0
        %883 = vmatpush.msra.mxu0 0.0
        %884 = vmatpush.msra.mxu0 0.0
        %885 = vmatpush.msra.mxu0 %v868
        %886 = vmatmul.f32.gmra.mxu0 %v841
        %v887 = vpop.f32.mrf.mxu0
        %v888 = vadd.f32 0.0, %v887
        %889 = vmatmul.f32.gmra.mxu0 %v844
        %v890 = vpop.f32.mrf.mxu0
        %v891 = vadd.f32 0.0, %v890
        %892 = vmatmul.f32.gmra.mxu0 %v847
        %v893 = vpop.f32.mrf.mxu0
        %v894 = vadd.f32 0.0, %v893
        %895 = vmatmul.f32.gmra.mxu0 %v850
        %v896 = vpop.f32.mrf.mxu0
        %v897 = vadd.f32 0.0, %v896
        %898 = vmatmul.f32.gmra.mxu0 %v853
        %v899 = vpop.f32.mrf.mxu0
        %v900 = vadd.f32 0.0, %v899
        %901 = vmatmul.f32.gmra.mxu0 %v856
        %v902 = vpop.f32.mrf.mxu0
        %v903 = vadd.f32 0.0, %v902
        %904 = vmatmul.f32.gmra.mxu0 %v859
        %v905 = vpop.f32.mrf.mxu0
        %v906 = vadd.f32 0.0, %v905
        %907 = vmatmul.f32.gmra.mxu0 %v862
        %v908 = vpop.f32.mrf.mxu0
        %v909 = vadd.f32 0.0, %v908
        %910 = vmatmul.f32.gmra.mxu0 %v865
        %v911 = vpop.f32.mrf.mxu0
        %v912 = vadd.f32 0.0, %v911
        %913 = vdwg.mxu0
        %v914 = vadd.f32 %v829, %v888
        %v915 = vadd.f32 %v830, %v891
        %v916 = vadd.f32 %v831, %v894
        %v917 = vadd.f32 %v832, %v897
        %v918 = vadd.f32 %v833, %v900
        %v919 = vadd.f32 %v834, %v903
        %v920 = vadd.f32 %v835, %v906
        %v921 = vadd.f32 %v836, %v909
        %v922 = vadd.f32 %v837, %v912
        %923 = vst [vmem:[#allocation2] sm:$0xff] %v914
        %924 = vst [vmem:[#allocation2 + $0x8] sm:$0xff] %v915
        %925 = vst [vmem:[#allocation2 + $0x10] sm:$0xff] %v916
        %926 = vst [vmem:[#allocation2 + $0x18] sm:$0xff] %v917
        %927 = vst [vmem:[#allocation2 + $0x20] sm:$0xff] %v918
        %928 = vst [vmem:[#allocation2 + $0x28] sm:$0xff] %v919
        %929 = vst [vmem:[#allocation2 + $0x30] sm:$0xff] %v920
        %930 = vst [vmem:[#allocation2 + $0x38] sm:$0xff] %v921
        %931 = vst [vmem:[#allocation2 + $0x40] sm:$0xff] %v922
        %v932 = vld [vmem:[%s232 + $0x9] sm:$0xff]
        %v933 = vld [vmem:[%s232 + $0x11] sm:$0xff]
        %v934 = vld [vmem:[%s232 + $0x19] sm:$0xff]
        %v935 = vld [vmem:[%s232 + $0x21] sm:$0xff]
        %v936 = vld [vmem:[%s232 + $0x29] sm:$0xff]
        %v937 = vld [vmem:[%s232 + $0x31] sm:$0xff]
        %v938 = vld [vmem:[%s232 + $0x39] sm:$0xff]
        %v939 = vld [vmem:[%s232 + $0x41] sm:$0xff]
        %v940 = vld [vmem:[%s232 + $0x49] sm:$0xff]
        %v941 = vld [vmem:[#allocation2] sm:$0xff]
        %v942 = vld [vmem:[#allocation2 + $0x8] sm:$0xff]
        %v943 = vld [vmem:[#allocation2 + $0x10] sm:$0xff]
        %v944 = vld [vmem:[#allocation2 + $0x18] sm:$0xff]
        %v945 = vld [vmem:[#allocation2 + $0x20] sm:$0xff]
        %v946 = vld [vmem:[#allocation2 + $0x28] sm:$0xff]
        %v947 = vld [vmem:[#allocation2 + $0x30] sm:$0xff]
        %v948 = vld [vmem:[#allocation2 + $0x38] sm:$0xff]
        %v949 = vld [vmem:[#allocation2 + $0x40] sm:$0xff]
        %s950 = scalar_lea.vmem %s239, 24
        %v951 = vld [vmem:[%s950] sm:$0xf]
        %v953 = vsel %vm275, %v932, 0
        %v956 = vsel %vm275, %v933, 0
        %v959 = vsel %vm275, %v934, 0
        %v962 = vsel %vm275, %v935, 0
        %v965 = vsel %vm275, %v936, 0
        %v968 = vsel %vm275, %v937, 0
        %v971 = vsel %vm275, %v938, 0
        %v974 = vsel %vm275, %v939, 0
        %v977 = vsel %vm275, %v940, 0
        %v980 = vsel %vm303, %v951, 0
        %982 = vmatpush.msra.mxu0 0.0
        %983 = vmatpush.msra.mxu0 0.0
        %984 = vmatpush.msra.mxu0 0.0
        %985 = vmatpush.msra.mxu0 0.0
        %986 = vmatpush.msra.mxu0 0.0
        %987 = vmatpush.msra.mxu0 0.0
        %988 = vmatpush.msra.mxu0 0.0
        %989 = vmatpush.msra.mxu0 0.0
        %990 = vmatpush.msra.mxu0 0.0
        %991 = vmatpush.msra.mxu0 0.0
        %992 = vmatpush.msra.mxu0 0.0
        %993 = vmatpush.msra.mxu0 0.0
        %994 = vmatpush.msra.mxu0 0.0
        %995 = vmatpush.msra.mxu0 0.0
        %996 = vmatpush.msra.mxu0 0.0
        %997 = vmatpush.msra.mxu0 %v980
        %998 = vmatmul.f32.gmra.mxu0 %v953
        %v999 = vpop.f32.mrf.mxu0
        %v1000 = vadd.f32 0.0, %v999
        %1001 = vmatmul.f32.gmra.mxu0 %v956
        %v1002 = vpop.f32.mrf.mxu0
        %v1003 = vadd.f32 0.0, %v1002
        %1004 = vmatmul.f32.gmra.mxu0 %v959
        %v1005 = vpop.f32.mrf.mxu0
        %v1006 = vadd.f32 0.0, %v1005
        %1007 = vmatmul.f32.gmra.mxu0 %v962
        %v1008 = vpop.f32.mrf.mxu0
        %v1009 = vadd.f32 0.0, %v1008
        %1010 = vmatmul.f32.gmra.mxu0 %v965
        %v1011 = vpop.f32.mrf.mxu0
        %v1012 = vadd.f32 0.0, %v1011
        %1013 = vmatmul.f32.gmra.mxu0 %v968
        %v1014 = vpop.f32.mrf.mxu0
        %v1015 = vadd.f32 0.0, %v1014
        %1016 = vmatmul.f32.gmra.mxu0 %v971
        %v1017 = vpop.f32.mrf.mxu0
        %v1018 = vadd.f32 0.0, %v1017
        %1019 = vmatmul.f32.gmra.mxu0 %v974
        %v1020 = vpop.f32.mrf.mxu0
        %v1021 = vadd.f32 0.0, %v1020
        %1022 = vmatmul.f32.gmra.mxu0 %v977
        %v1023 = vpop.f32.mrf.mxu0
        %v1024 = vadd.f32 0.0, %v1023
        %1025 = vdwg.mxu0
        %v1026 = vadd.f32 %v941, %v1000
        %v1027 = vadd.f32 %v942, %v1003
        %v1028 = vadd.f32 %v943, %v1006
        %v1029 = vadd.f32 %v944, %v1009
        %v1030 = vadd.f32 %v945, %v1012
        %v1031 = vadd.f32 %v946, %v1015
        %v1032 = vadd.f32 %v947, %v1018
        %v1033 = vadd.f32 %v948, %v1021
        %v1034 = vadd.f32 %v949, %v1024
        %1035 = vst [vmem:[#allocation2] sm:$0xff] %v1026
        %1036 = vst [vmem:[#allocation2 + $0x8] sm:$0xff] %v1027
        %1037 = vst [vmem:[#allocation2 + $0x10] sm:$0xff] %v1028
        %1038 = vst [vmem:[#allocation2 + $0x18] sm:$0xff] %v1029
        %1039 = vst [vmem:[#allocation2 + $0x20] sm:$0xff] %v1030
        %1040 = vst [vmem:[#allocation2 + $0x28] sm:$0xff] %v1031
        %1041 = vst [vmem:[#allocation2 + $0x30] sm:$0xff] %v1032
        %1042 = vst [vmem:[#allocation2 + $0x38] sm:$0xff] %v1033
        %1043 = vst [vmem:[#allocation2 + $0x40] sm:$0xff] %v1034
        %v1044 = vld [vmem:[%s369 + $0x9] sm:$0xff]
        %v1045 = vld [vmem:[%s369 + $0x11] sm:$0xff]
        %v1046 = vld [vmem:[%s369 + $0x19] sm:$0xff]
        %v1047 = vld [vmem:[%s369 + $0x21] sm:$0xff]
        %v1048 = vld [vmem:[%s369 + $0x29] sm:$0xff]
        %v1049 = vld [vmem:[%s369 + $0x31] sm:$0xff]
        %v1050 = vld [vmem:[%s369 + $0x39] sm:$0xff]
        %v1051 = vld [vmem:[%s369 + $0x41] sm:$0xff]
        %v1052 = vld [vmem:[%s369 + $0x49] sm:$0xff]
        %v1053 = vld [vmem:[#allocation2] sm:$0xff]
        %v1054 = vld [vmem:[#allocation2 + $0x8] sm:$0xff]
        %v1055 = vld [vmem:[#allocation2 + $0x10] sm:$0xff]
        %v1056 = vld [vmem:[#allocation2 + $0x18] sm:$0xff]
        %v1057 = vld [vmem:[#allocation2 + $0x20] sm:$0xff]
        %v1058 = vld [vmem:[#allocation2 + $0x28] sm:$0xff]
        %v1059 = vld [vmem:[#allocation2 + $0x30] sm:$0xff]
        %v1060 = vld [vmem:[#allocation2 + $0x38] sm:$0xff]
        %v1061 = vld [vmem:[#allocation2 + $0x40] sm:$0xff]
        %s1062 = scalar_lea.vmem %s239, 28
        %v1063 = vld [vmem:[%s1062] sm:$0xf]
        %v1065 = vsel %vm275, %v1044, 0
        %v1068 = vsel %vm275, %v1045, 0
        %v1071 = vsel %vm275, %v1046, 0
        %v1074 = vsel %vm275, %v1047, 0
        %v1077 = vsel %vm275, %v1048, 0
        %v1080 = vsel %vm275, %v1049, 0
        %v1083 = vsel %vm275, %v1050, 0
        %v1086 = vsel %vm275, %v1051, 0
        %v1089 = vsel %vm275, %v1052, 0
        %v1092 = vsel %vm303, %v1063, 0
        %1094 = vmatpush.msra.mxu0 0.0
        %1095 = vmatpush.msra.mxu0 0.0
        %1096 = vmatpush.msra.mxu0 0.0
        %1097 = vmatpush.msra.mxu0 0.0
        %1098 = vmatpush.msra.mxu0 0.0
        %1099 = vmatpush.msra.mxu0 0.0
        %1100 = vmatpush.msra.mxu0 0.0
        %1101 = vmatpush.msra.mxu0 0.0
        %1102 = vmatpush.msra.mxu0 0.0
        %1103 = vmatpush.msra.mxu0 0.0
        %1104 = vmatpush.msra.mxu0 0.0
        %1105 = vmatpush.msra.mxu0 0.0
        %1106 = vmatpush.msra.mxu0 0.0
        %1107 = vmatpush.msra.mxu0 0.0
        %1108 = vmatpush.msra.mxu0 0.0
        %1109 = vmatpush.msra.mxu0 %v1092
        %1110 = vmatmul.f32.gmra.mxu0 %v1065
        %v1111 = vpop.f32.mrf.mxu0
        %v1112 = vadd.f32 0.0, %v1111
        %1113 = vmatmul.f32.gmra.mxu0 %v1068
        %v1114 = vpop.f32.mrf.mxu0
        %v1115 = vadd.f32 0.0, %v1114
        %1116 = vmatmul.f32.gmra.mxu0 %v1071
        %v1117 = vpop.f32.mrf.mxu0
        %v1118 = vadd.f32 0.0, %v1117
        %1119 = vmatmul.f32.gmra.mxu0 %v1074
        %v1120 = vpop.f32.mrf.mxu0
        %v1121 = vadd.f32 0.0, %v1120
        %1122 = vmatmul.f32.gmra.mxu0 %v1077
        %v1123 = vpop.f32.mrf.mxu0
        %v1124 = vadd.f32 0.0, %v1123
        %1125 = vmatmul.f32.gmra.mxu0 %v1080
        %v1126 = vpop.f32.mrf.mxu0
        %v1127 = vadd.f32 0.0, %v1126
        %1128 = vmatmul.f32.gmra.mxu0 %v1083
        %v1129 = vpop.f32.mrf.mxu0
        %v1130 = vadd.f32 0.0, %v1129
        %1131 = vmatmul.f32.gmra.mxu0 %v1086
        %v1132 = vpop.f32.mrf.mxu0
        %v1133 = vadd.f32 0.0, %v1132
        %1134 = vmatmul.f32.gmra.mxu0 %v1089
        %v1135 = vpop.f32.mrf.mxu0
        %v1136 = vadd.f32 0.0, %v1135
        %1137 = vdwg.mxu0
        %v1138 = vadd.f32 %v1053, %v1112
        %v1139 = vadd.f32 %v1054, %v1115
        %v1140 = vadd.f32 %v1055, %v1118
        %v1141 = vadd.f32 %v1056, %v1121
        %v1142 = vadd.f32 %v1057, %v1124
        %v1143 = vadd.f32 %v1058, %v1127
        %v1144 = vadd.f32 %v1059, %v1130
        %v1145 = vadd.f32 %v1060, %v1133
        %v1146 = vadd.f32 %v1061, %v1136
        %1147 = vst [vmem:[#allocation2] sm:$0xff] %v1138
        %1148 = vst [vmem:[#allocation2 + $0x8] sm:$0xff] %v1139
        %1149 = vst [vmem:[#allocation2 + $0x10] sm:$0xff] %v1140
        %1150 = vst [vmem:[#allocation2 + $0x18] sm:$0xff] %v1141
        %1151 = vst [vmem:[#allocation2 + $0x20] sm:$0xff] %v1142
        %1152 = vst [vmem:[#allocation2 + $0x28] sm:$0xff] %v1143
        %1153 = vst [vmem:[#allocation2 + $0x30] sm:$0xff] %v1144
        %1154 = vst [vmem:[#allocation2 + $0x38] sm:$0xff] %v1145
        %1155 = vst [vmem:[#allocation2 + $0x40] sm:$0xff] %v1146
        %v1156 = vld [vmem:[%s232 + $0xa] sm:$0xff]
        %v1157 = vld [vmem:[%s232 + $0x12] sm:$0xff]
        %v1158 = vld [vmem:[%s232 + $0x1a] sm:$0xff]
        %v1159 = vld [vmem:[%s232 + $0x22] sm:$0xff]
        %v1160 = vld [vmem:[%s232 + $0x2a] sm:$0xff]
        %v1161 = vld [vmem:[%s232 + $0x32] sm:$0xff]
        %v1162 = vld [vmem:[%s232 + $0x3a] sm:$0xff]
        %v1163 = vld [vmem:[%s232 + $0x42] sm:$0xff]
        %v1164 = vld [vmem:[%s232 + $0x4a] sm:$0xff]
        %v1165 = vld [vmem:[#allocation2] sm:$0xff]
        %v1166 = vld [vmem:[#allocation2 + $0x8] sm:$0xff]
        %v1167 = vld [vmem:[#allocation2 + $0x10] sm:$0xff]
        %v1168 = vld [vmem:[#allocation2 + $0x18] sm:$0xff]
        %v1169 = vld [vmem:[#allocation2 + $0x20] sm:$0xff]
        %v1170 = vld [vmem:[#allocation2 + $0x28] sm:$0xff]
        %v1171 = vld [vmem:[#allocation2 + $0x30] sm:$0xff]
        %v1172 = vld [vmem:[#allocation2 + $0x38] sm:$0xff]
        %v1173 = vld [vmem:[#allocation2 + $0x40] sm:$0xff]
        %s1174 = scalar_lea.vmem %s239, 32
        %v1175 = vld [vmem:[%s1174] sm:$0xf]
        %v1177 = vsel %vm275, %v1156, 0
        %v1180 = vsel %vm275, %v1157, 0
        %v1183 = vsel %vm275, %v1158, 0
        %v1186 = vsel %vm275, %v1159, 0
        %v1189 = vsel %vm275, %v1160, 0
        %v1192 = vsel %vm275, %v1161, 0
        %v1195 = vsel %vm275, %v1162, 0
        %v1198 = vsel %vm275, %v1163, 0
        %v1201 = vsel %vm275, %v1164, 0
        %v1204 = vsel %vm303, %v1175, 0
        %1206 = vmatpush.msra.mxu0 0.0
        %1207 = vmatpush.msra.mxu0 0.0
        %1208 = vmatpush.msra.mxu0 0.0
        %1209 = vmatpush.msra.mxu0 0.0
        %1210 = vmatpush.msra.mxu0 0.0
        %1211 = vmatpush.msra.mxu0 0.0
        %1212 = vmatpush.msra.mxu0 0.0
        %1213 = vmatpush.msra.mxu0 0.0
        %1214 = vmatpush.msra.mxu0 0.0
        %1215 = vmatpush.msra.mxu0 0.0
        %1216 = vmatpush.msra.mxu0 0.0
        %1217 = vmatpush.msra.mxu0 0.0
        %1218 = vmatpush.msra.mxu0 0.0
        %1219 = vmatpush.msra.mxu0 0.0
        %1220 = vmatpush.msra.mxu0 0.0
        %1221 = vmatpush.msra.mxu0 %v1204
        %1222 = vmatmul.f32.gmra.mxu0 %v1177
        %v1223 = vpop.f32.mrf.mxu0
        %v1224 = vadd.f32 0.0, %v1223
        %1225 = vmatmul.f32.gmra.mxu0 %v1180
        %v1226 = vpop.f32.mrf.mxu0
        %v1227 = vadd.f32 0.0, %v1226
        %1228 = vmatmul.f32.gmra.mxu0 %v1183
        %v1229 = vpop.f32.mrf.mxu0
        %v1230 = vadd.f32 0.0, %v1229
        %1231 = vmatmul.f32.gmra.mxu0 %v1186
        %v1232 = vpop.f32.mrf.mxu0
        %v1233 = vadd.f32 0.0, %v1232
        %1234 = vmatmul.f32.gmra.mxu0 %v1189
        %v1235 = vpop.f32.mrf.mxu0
        %v1236 = vadd.f32 0.0, %v1235
        %1237 = vmatmul.f32.gmra.mxu0 %v1192
        %v1238 = vpop.f32.mrf.mxu0
        %v1239 = vadd.f32 0.0, %v1238
        %1240 = vmatmul.f32.gmra.mxu0 %v1195
        %v1241 = vpop.f32.mrf.mxu0
        %v1242 = vadd.f32 0.0, %v1241
        %1243 = vmatmul.f32.gmra.mxu0 %v1198
        %v1244 = vpop.f32.mrf.mxu0
        %v1245 = vadd.f32 0.0, %v1244
        %1246 = vmatmul.f32.gmra.mxu0 %v1201
        %v1247 = vpop.f32.mrf.mxu0
        %v1248 = vadd.f32 0.0, %v1247
        %1249 = vdwg.mxu0
        %v1250 = vadd.f32 %v1165, %v1224
        %v1251 = vadd.f32 %v1166, %v1227
        %v1252 = vadd.f32 %v1167, %v1230
        %v1253 = vadd.f32 %v1168, %v1233
        %v1254 = vadd.f32 %v1169, %v1236
        %v1255 = vadd.f32 %v1170, %v1239
        %v1256 = vadd.f32 %v1171, %v1242
        %v1257 = vadd.f32 %v1172, %v1245
        %v1258 = vadd.f32 %v1173, %v1248
        %1259 = vst [vmem:[#allocation2] sm:$0xff] %v1250
        %1260 = vst [vmem:[#allocation2 + $0x8] sm:$0xff] %v1251
        %1261 = vst [vmem:[#allocation2 + $0x10] sm:$0xff] %v1252
        %1262 = vst [vmem:[#allocation2 + $0x18] sm:$0xff] %v1253
        %1263 = vst [vmem:[#allocation2 + $0x20] sm:$0xff] %v1254
        %1264 = vst [vmem:[#allocation2 + $0x28] sm:$0xff] %v1255
        %1265 = vst [vmem:[#allocation2 + $0x30] sm:$0xff] %v1256
        %1266 = vst [vmem:[#allocation2 + $0x38] sm:$0xff] %v1257
        %1267 = vst [vmem:[#allocation2 + $0x40] sm:$0xff] %v1258
        // Predicated region
        $region37: #{tpu_custom_call.1} parent=31 // pred_check
          %p1268 = pneg %p243
        $region38: #{tpu_custom_call.1} parent=31 // pred_check_branch
          %1270 = sbr.rel (%p1268) target = $region40
        $region39: #{tpu_custom_call.1} parent=31 // pred_region
          %v1271 = vld [vmem:[#allocation2] sm:$0xff]
          %v1272 = vld [vmem:[#allocation2 + $0x8] sm:$0xff]
          %v1273 = vld [vmem:[#allocation2 + $0x10] sm:$0xff]
          %v1274 = vld [vmem:[#allocation2 + $0x18] sm:$0xff]
          %v1275 = vld [vmem:[#allocation2 + $0x20] sm:$0xff]
          %v1276 = vld [vmem:[#allocation2 + $0x28] sm:$0xff]
          %v1277 = vld [vmem:[#allocation2 + $0x30] sm:$0xff]
          %v1278 = vld [vmem:[#allocation2 + $0x38] sm:$0xff]
          %v1279 = vld [vmem:[#allocation2 + $0x40] sm:$0xff]
          %v1280 = vld [vmem:[%s242] sm:$0x1]
          %v1282 = vperm.slane %v1280, 0
          %v1284 = vadd.f32 %v1271, %v1282
          %v1285 = vadd.f32 %v1272, %v1282
          %v1286 = vadd.f32 %v1273, %v1282
          %v1287 = vadd.f32 %v1274, %v1282
          %v1288 = vadd.f32 %v1275, %v1282
          %v1289 = vadd.f32 %v1276, %v1282
          %v1290 = vadd.f32 %v1277, %v1282
          %v1291 = vadd.f32 %v1278, %v1282
          %v1292 = vadd.f32 %v1279, %v1282
          %1293 = vst [vmem:[%s224] sm:$0xff] %v1284
          %1294 = vst [vmem:[%s224 + $0x8] sm:$0xff] %v1285
          %1295 = vst [vmem:[%s224 + $0x10] sm:$0xff] %v1286
          %1296 = vst [vmem:[%s224 + $0x18] sm:$0xff] %v1287
          %1297 = vst [vmem:[%s224 + $0x20] sm:$0xff] %v1288
          %1298 = vst [vmem:[%s224 + $0x28] sm:$0xff] %v1289
          %1299 = vst [vmem:[%s224 + $0x30] sm:$0xff] %v1290
          %1300 = vst [vmem:[%s224 + $0x38] sm:$0xff] %v1291
          %1301 = vst [vmem:[%s224 + $0x40] sm:$0xff] %v1292
        $region40: #{tpu_custom_call.1} parent=31 // pred_fallthru
          _
        %s1302 = sand.u32 %s128, 1
        %s1303 = scalar_lea.sflag [#allocation4], %s1302
        %s1304 = sand.u32 %s128, 1
        %s1305 = smul.addr %s1304, 72
        %s1306 = scalar_lea.vmem [#allocation3], %s1305
        // Predicated region
        $region41: #{tpu_custom_call.1} parent=31 // pred_check
          %p1307 = pneg %p138
        $region42: #{tpu_custom_call.1} parent=31 // pred_check_branch
          %1309 = sbr.rel (%p1307) target = $region44
        $region43: #{tpu_custom_call.1} parent=31 // pred_region
          %1311 = vsyncadd %s1303, 0
          %s1312 = smul.addr %s22, 9
          %s1313 = sadd.s32 %s23, %s1312
          %s1314 = smul.addr %s1313, 8
          %s1315 = scalar_lea.hbm %s3, %s1314
          %s1316 = sshll.u32 %s1306, 4
          %s1317 = int_to_ptr.vmem [resolvable:$true] %s1316
          %s1318 = sshll.u32 %s1315, 4
          %s1319 = int_to_ptr.hbm [resolvable:$true] %s1318
          %1324 = dma.vmem_to_hbm [thread:$0]  %s1317, 1152, %s1319, %s1303, 128, 128, 8
        $region44: #{tpu_custom_call.1} parent=31 // pred_fallthru
          _
      $region32: #{tpu_custom_call.1} parent=5 // pred_fallthru
        _
      %p1325 = scmp.le.s32.totalorder 2, %s12
      // Predicated region
      $region45: #{tpu_custom_call.1} parent=5 // pred_check
        %p1326 = pneg %p1325
      $region46: #{tpu_custom_call.1} parent=5 // pred_check_branch
        %1328 = sbr.rel (%p1326) target = $region48
      $region47: #{tpu_custom_call.1} parent=5 // pred_region
        %s1329 = ssub.s32 %s12, 2
        // Predicated region
        $region49: #{tpu_custom_call.1} parent=47 // pred_check
          %p1330 = pneg %p144
        $region50: #{tpu_custom_call.1} parent=47 // pred_check_branch
          %1332 = sbr.rel (%p1330) target = $region52
        $region51: #{tpu_custom_call.1} parent=47 // pred_region
          %s1333 = sand.u32 %s129, 1
          %s1334 = scalar_lea.sflag [#allocation4], %s1333
          %s1335 = sand.u32 %s129, 1
          %s1336 = smul.addr %s1335, 72
          %s1337 = scalar_lea.vmem [#allocation3], %s1336
          %1339 = dma.done %s1334, 1152
        $region52: #{tpu_custom_call.1} parent=47 // pred_fallthru
          _
      $region48: #{tpu_custom_call.1} parent=5 // pred_fallthru
        _
    $region6: #{tpu_custom_call.1} parent=1 // loop_footer
      %s16 = sadd.s32 1, %s12
    $region7: #{tpu_custom_call.1} parent=1 // loop_footer_branch
      %11 = sbr.rel target = $region3
    $region8: #{tpu_custom_call.1} parent=1 // loop_exit
      _
    %1340 = vsyncpa [#allocation4], 1
    %s1341 = scalar_lea.sflag [#allocation4], 1
    %1342 = vsyncpa %s1341, 1

</llo_original>
